<compile_context>
chip_gen: v6e
topology: v6e:2x2x1
jax: 0.10.0
libtpu: 0.0.40
codegen_flags: <defaults>
</compile_context>

<pallas_src>
import functools

import jax
import jax.numpy as jnp
from jax.experimental import pallas as pl
from jax.experimental.pallas import tpu as pltpu


def _ceil_to(x, m):
    return (x + m - 1) // m * m


# ----------------------------------- kernel --------------------------------------
def inverted_residual_kernel(x_ref, col_ref,
                             w1_ref, s1_ref, b1_ref,
                             w2_ref, s2_ref, b2_ref,
                             w3_ref, s3_ref, b3_ref,
                             out_ref, hbuf_ref,
                             *, W, use_residual):
    hw = x_ref.shape[1]                       # H*W (flattened spatial grid)
    Chp = w1_ref.shape[1]                     # padded hidden channels (multiple of 128)
    pad = (hbuf_ref.shape[0] - hw) // 2       # zero-border rows of the conv2 scratch

    x = x_ref[0]                              # (hw, Cinp) f32, lane-dense

    # ---- conv1 (1x1) + BN1 + ReLU6 : bf16 MXU matmul, f32 accumulation ------------
    h = jnp.dot(x.astype(jnp.bfloat16), w1_ref[...],
                preferred_element_type=jnp.float32)                # (hw, Chp)
    h = jnp.clip(h * s1_ref[...] + b1_ref[...], 0.0, 6.0)

    # ---- conv2 (3x3 channelwise, zero pad=1, stride handled outside) --------------
    # Write h once (aligned, full-lane, unmasked store) into a zero-bordered scratch.
    # Each tap is a statically offset read; row overflow lands in the zero border,
    # column wrap-around is removed with a precomputed column-index mask.
    zero_border = jnp.zeros((pad, Chp), jnp.float32)
    hbuf_ref[pl.ds(0, pad), :] = zero_border
    hbuf_ref[pl.ds(pad + hw, pad), :] = zero_border
    hbuf_ref[pl.ds(pad, hw), :] = h

    col = col_ref[...]                        # (hw, Chp) int32: spatial column id
    w2 = w2_ref[...]                          # (9, Chp)  f32 (hoisted out of the loop)
    acc = None
    for k in range(9):                        # static unroll over the 3x3 taps
        dy, dx = k // 3 - 1, k % 3 - 1
        patch = hbuf_ref[pl.ds(pad + dy * W + dx, hw), :]          # (hw, Chp)
        if dx > 0:
            patch = jnp.where(col < W - dx, patch, 0.0)
        elif dx < 0:
            patch = jnp.where(col >= -dx, patch, 0.0)
        term = patch * w2[k:k + 1, :]
        acc = term if acc is None else acc + term
    h2 = jnp.clip(acc * s2_ref[...] + b2_ref[...], 0.0, 6.0)       # (hw, Chp)

    # ---- conv3 (1x1) + BN3 (+ residual) : bf16 MXU matmul, f32 accumulation -------
    y = jnp.dot(h2.astype(jnp.bfloat16), w3_ref[...],
                preferred_element_type=jnp.float32)                # (hw, Coutp)
    y = y * s3_ref[...] + b3_ref[...]
    if use_residual:                          # static: stride==1 and Cin==Cout
        y = y + x
    out_ref[0] = y.astype(out_ref.dtype)


# ----------------------------------- wrapper --------------------------------------
def inverted_residual_block(x, params, *, stride=1, use_residual=None):
    """x: (B, H, W, Cin) float32 -> (B, ceil(H/stride), ceil(W/stride), Cout)."""
    B, H, W, Cin = x.shape
    w1, s1, b1, w2, s2, b2, w3, s3, b3 = params
    Ch = w1.shape[1]
    Cout = w3.shape[1]
    if use_residual is None:
        use_residual = (Cin == Cout) and (stride == 1)

    LANE = 128
    Cinp = _ceil_to(Cin, LANE)
    Chp = _ceil_to(Ch, LANE)
    Coutp = _ceil_to(Cout, LANE)
    hw = H * W
    pad_rows = _ceil_to(W + 1, 8)             # >= W+1 and sublane-aligned

    # Lane-dense packing: zero-pad every channel axis to a multiple of 128 (padded
    # lanes carry exact zeros end-to-end) and flatten the spatial grid.
    f32 = jnp.float32
    xp = jnp.pad(x.astype(f32),
                 ((0, 0), (0, 0), (0, 0), (0, Cinp - Cin))).reshape(B, hw, Cinp)
    w1p = jnp.pad(w1, ((0, Cinp - Cin), (0, Chp - Ch))).astype(jnp.bfloat16)
    w2p = jnp.pad(w2, ((0, 0), (0, Chp - Ch))).astype(f32)
    w3p = jnp.pad(w3, ((0, Chp - Ch), (0, Coutp - Cout))).astype(jnp.bfloat16)
    s1p = jnp.pad(s1, ((0, 0), (0, Chp - Ch))).astype(f32)
    b1p = jnp.pad(b1, ((0, 0), (0, Chp - Ch))).astype(f32)
    s2p = jnp.pad(s2, ((0, 0), (0, Chp - Ch))).astype(f32)
    b2p = jnp.pad(b2, ((0, 0), (0, Chp - Ch))).astype(f32)
    s3p = jnp.pad(s3, ((0, 0), (0, Coutp - Cout))).astype(f32)
    b3p = jnp.pad(b3, ((0, 0), (0, Coutp - Cout))).astype(f32)

    # Static column index of every flattened position (lane-broadcast), for edge masks.
    col_ids = jnp.broadcast_to(
        (jnp.arange(hw, dtype=jnp.int32) % W)[:, None], (hw, Chp))

    kernel = functools.partial(inverted_residual_kernel,
                               W=W, use_residual=use_residual)

    flops = 2 * B * hw * (Cinp * Chp + Chp * Coutp) + 2 * 9 * B * hw * Chp
    bytes_accessed = (xp.size * 4 + col_ids.size * 4 + B * hw * Coutp * 4 +
                      w1p.size * 2 + w3p.size * 2 +
                      (w2p.size + s1p.size + b1p.size + s2p.size + b2p.size +
                       s3p.size + b3p.size) * 4)

    def rep2(a):  # grid-invariant 2-D operand (weights, scales, index map)
        return pl.BlockSpec(a.shape, lambda b: (0, 0))

    out = pl.pallas_call(
        kernel,
        out_shape=jax.ShapeDtypeStruct((B, hw, Coutp), x.dtype),
        grid=(B,),
        in_specs=[pl.BlockSpec((1, hw, Cinp), lambda b: (b, 0, 0)),
                  rep2(col_ids),
                  rep2(w1p), rep2(s1p), rep2(b1p),
                  rep2(w2p), rep2(s2p), rep2(b2p),
                  rep2(w3p), rep2(s3p), rep2(b3p)],
        out_specs=pl.BlockSpec((1, hw, Coutp), lambda b: (b, 0, 0)),
        scratch_shapes=[pltpu.VMEM((2 * pad_rows + hw, Chp), jnp.float32)],
        compiler_params=pltpu.CompilerParams(
            dimension_semantics=("parallel",),          # batch split across TCs on v7x
            vmem_limit_bytes=32 * 1024 * 1024),
        cost_estimate=pl.CostEstimate(flops=flops, transcendentals=0,
                                      bytes_accessed=bytes_accessed),
    )(xp, col_ids, w1p, s1p, b1p, w2p, s2p, b2p, w3p, s3p, b3p)

    y = out.reshape(B, H, W, Coutp)[..., :Cout]
    if stride > 1:
        # TODO(synk): for large feature maps, subsample inside the kernel (and tile H
        # into row strips with a 1-row halo) instead of post-slicing the stride-1 result.
        y = y[:, ::stride, ::stride, :]
    return y


# --------------------------- parameter construction -------------------------------
def make_params(key, in_channels, out_channels, expand_ratio, eps=1e-5):
    hidden = int(round(in_channels * expand_ratio))
    ks = jax.random.split(key, 15)

    def bn(gk, bk, mk, vk, c):
        gamma = jax.random.uniform(gk, (c,), minval=0.5, maxval=1.5)
        beta = 0.1 * jax.random.normal(bk, (c,))
        mean = 0.1 * jax.random.normal(mk, (c,))
        var = jax.random.uniform(vk, (c,), minval=0.5, maxval=1.5)
        scale = gamma / jnp.sqrt(var + eps)
        bias = beta - mean * scale
        return (scale.reshape(1, c).astype(jnp.float32),
                bias.reshape(1, c).astype(jnp.float32))

    w1 = (jax.random.normal(ks[0], (in_channels, hidden)) /
          jnp.sqrt(in_channels)).astype(jnp.float32)
    s1, b1 = bn(ks[1], ks[2], ks[3], ks[4], hidden)
    w2 = (jax.random.normal(ks[5], (9, hidden)) / 3.0).astype(jnp.float32)
    s2, b2 = bn(ks[6], ks[7], ks[8], ks[9], hidden)
    w3 = (jax.random.normal(ks[10], (hidden, out_channels)) /
          jnp.sqrt(hidden)).astype(jnp.float32)
    s3, b3 = bn(ks[11], ks[12], ks[13], ks[14], out_channels)
    return (w1, s1, b1, w2, s2, b2, w3, s3, b3)


# ------------------------------ pure-JAX reference ---------------------------------
def reference(x, params, *, stride, use_residual, mm_dtype=jnp.float32):
    w1, s1, b1, w2, s2, b2, w3, s3, b3 = params
    f32 = jnp.float32
    h = jnp.einsum('bhwc,cd->bhwd', x.astype(mm_dtype), w1.astype(mm_dtype),
                   preferred_element_type=f32)
    h = jnp.clip(h * s1[0] + b1[0], 0.0, 6.0)
    B, H, W, Ch = h.shape
    hp = jnp.pad(h, ((0, 0), (1, 1), (1, 1), (0, 0)))
    acc = jnp.zeros((B, H, W, Ch), f32)
    for k in range(9):
        dy, dx = k // 3, k % 3
        acc = acc + hp[:, dy:dy + H, dx:dx + W, :] * w2[k]
    h2 = jnp.clip(acc * s2[0] + b2[0], 0.0, 6.0)
    y = jnp.einsum('bhwc,cd->bhwd', h2.astype(mm_dtype), w3.astype(mm_dtype),
                   preferred_element_type=f32)
    y = y * s3[0] + b3[0]
    if use_residual:
        y = y + x
    if stride > 1:
        y = y[:, ::stride, ::stride, :]
    return y


if __name__ == "__main__":
    # Small shapes consistent with the module: batch=2, in=out=4 channels, 16x16 grid,
    # expand_ratio=4 -> hidden=16.  stride=1 exercises the residual path; stride=2 the
    # downsampling path (no residual).
    B, H, W = 2, 16, 16
    in_channels, out_channels, expand_ratio = 4, 4, 4

    key = jax.random.PRNGKey(0)
    kx, kp = jax.random.split(key)
    x = 0.5 * jax.random.normal(kx, (B, H, W, in_channels), dtype=jnp.float32)
    params = make_params(kp, in_channels, out_channels, expand_ratio)

    for stride in (1, 2):
        use_residual = (in_channels == out_channels) and (stride == 1)
        out = jax.block_until_ready(
            inverted_residual_block(x, params, stride=stride,
                                    use_residual=use_residual))

        # Tight check against a reference with matching bf16 matmul inputs.
        ref_mixed = reference(x, params, stride=stride, use_residual=use_residual,
                              mm_dtype=jnp.bfloat16)
        # Loose check against the pure-f32 module semantics (bf16 MXU noise only).
        ref_f32 = reference(x, params, stride=stride, use_residual=use_residual)

        assert out.shape == ref_f32.shape, (out.shape, ref_f32.shape)
        assert jnp.allclose(out, ref_mixed, rtol=2e-2, atol=2e-2), \
            float(jnp.max(jnp.abs(out - ref_mixed)))
        assert jnp.allclose(out, ref_f32, rtol=1e-1, atol=1e-1), \
            float(jnp.max(jnp.abs(out - ref_f32)))

    print("KERNEL_OK")
</pallas_src>

<mosaic_0001>
module attributes {stable_mosaic.version = 11 : i64} {
  func.func @inverted_residual_kernel(%arg0: i32, %arg1: memref<1x256x128xf32, #tpu.memory_space<vmem>>, %arg2: memref<256x128xi32, #tpu.memory_space<vmem>>, %arg3: memref<128x128xbf16, #tpu.memory_space<vmem>>, %arg4: memref<1x128xf32, #tpu.memory_space<vmem>>, %arg5: memref<1x128xf32, #tpu.memory_space<vmem>>, %arg6: memref<9x128xf32, #tpu.memory_space<vmem>>, %arg7: memref<1x128xf32, #tpu.memory_space<vmem>>, %arg8: memref<1x128xf32, #tpu.memory_space<vmem>>, %arg9: memref<128x128xbf16, #tpu.memory_space<vmem>>, %arg10: memref<1x128xf32, #tpu.memory_space<vmem>>, %arg11: memref<1x128xf32, #tpu.memory_space<vmem>>, %arg12: memref<1x256x128xf32, #tpu.memory_space<vmem>>, %arg13: memref<304x128xf32, #tpu.memory_space<vmem>>) attributes {dimension_semantics = [#tpu.dimension_semantics<parallel>], iteration_bounds = array<i64: 2>, scalar_prefetch = 0 : i64, scratch_operands = 1 : i64, tpu.core_type = #tpu.core_type<tc>, window_params = [{transform_indices = @transform_0, window_bounds = array<i64: 1, 256, 128>}, {pipeline_mode = #tpu.pipeline_mode<synchronous>, transform_indices = @transform_1, window_bounds = array<i64: 256, 128>}, {pipeline_mode = #tpu.pipeline_mode<synchronous>, transform_indices = @transform_2, window_bounds = array<i64: 128, 128>}, {pipeline_mode = #tpu.pipeline_mode<synchronous>, transform_indices = @transform_3, window_bounds = array<i64: 1, 128>}, {pipeline_mode = #tpu.pipeline_mode<synchronous>, transform_indices = @transform_4, window_bounds = array<i64: 1, 128>}, {pipeline_mode = #tpu.pipeline_mode<synchronous>, transform_indices = @transform_5, window_bounds = array<i64: 9, 128>}, {pipeline_mode = #tpu.pipeline_mode<synchronous>, transform_indices = @transform_6, window_bounds = array<i64: 1, 128>}, {pipeline_mode = #tpu.pipeline_mode<synchronous>, transform_indices = @transform_7, window_bounds = array<i64: 1, 128>}, {pipeline_mode = #tpu.pipeline_mode<synchronous>, transform_indices = @transform_8, window_bounds = array<i64: 128, 128>}, {pipeline_mode = #tpu.pipeline_mode<synchronous>, transform_indices = @transform_9, window_bounds = array<i64: 1, 128>}, {pipeline_mode = #tpu.pipeline_mode<synchronous>, transform_indices = @transform_10, window_bounds = array<i64: 1, 128>}, {transform_indices = @transform_11, window_bounds = array<i64: 1, 256, 128>}]} {
    %c0 = arith.constant 0 : index
    %c0_0 = arith.constant 0 : index
    %c0_1 = arith.constant 0 : index
    %0 = vector.load %arg1[%c0, %c0_0, %c0_1] : memref<1x256x128xf32, #tpu.memory_space<vmem>>, vector<1x256x128xf32>
    %1 = vector.shape_cast %0 : vector<1x256x128xf32> to vector<256x128xf32>
    %2 = arith.truncf %1 : vector<256x128xf32> to vector<256x128xbf16>
    %c0_2 = arith.constant 0 : index
    %c0_3 = arith.constant 0 : index
    %3 = vector.load %arg3[%c0_2, %c0_3] : memref<128x128xbf16, #tpu.memory_space<vmem>>, vector<128x128xbf16>
    %cst = arith.constant dense<0.000000e+00> : vector<256x128xf32>
    %4 = tpu.matmul %2, %3, %cst {dimension_numbers = #tpu.dot_dimension_numbers<[1], [0], [0], [1], [0, 0, 1, 1], [], []>} : vector<256x128xbf16>, vector<128x128xbf16>, vector<256x128xf32> -> vector<256x128xf32>
    %c0_4 = arith.constant 0 : index
    %c0_5 = arith.constant 0 : index
    %5 = vector.load %arg4[%c0_4, %c0_5] : memref<1x128xf32, #tpu.memory_space<vmem>>, vector<1x128xf32>
    %6 = vector.broadcast %5 : vector<1x128xf32> to vector<256x128xf32>
    %7 = arith.mulf %4, %6 : vector<256x128xf32>
    %c0_6 = arith.constant 0 : index
    %c0_7 = arith.constant 0 : index
    %8 = vector.load %arg5[%c0_6, %c0_7] : memref<1x128xf32, #tpu.memory_space<vmem>>, vector<1x128xf32>
    %9 = vector.broadcast %8 : vector<1x128xf32> to vector<256x128xf32>
    %10 = arith.addf %7, %9 : vector<256x128xf32>
    %cst_8 = arith.constant 0.000000e+00 : f32
    %cst_9 = arith.constant 6.000000e+00 : f32
    %11 = vector.broadcast %cst_8 : f32 to vector<256x128xf32>
    %12 = arith.maximumf %11, %10 : vector<256x128xf32>
    %13 = vector.broadcast %cst_9 : f32 to vector<256x128xf32>
    %14 = arith.minimumf %13, %12 : vector<256x128xf32>
    %cst_10 = arith.constant 0.000000e+00 : f32
    %15 = vector.broadcast %cst_10 : f32 to vector<24x128xf32>
    %c0_11 = arith.constant 0 : index
    %c0_12 = arith.constant 0 : index
    %16 = vector.load %arg13[%c0_11, %c0_12] : memref<304x128xf32, #tpu.memory_space<vmem>>, vector<24x128xf32>
    tpu.vector_store %arg13[%c0_11, %c0_12], %15 {strides = array<i32>} : memref<304x128xf32, #tpu.memory_space<vmem>>, vector<24x128xf32>,
    %c280 = arith.constant 280 : index
    %c0_13 = arith.constant 0 : index
    %17 = vector.load %arg13[%c280, %c0_13] : memref<304x128xf32, #tpu.memory_space<vmem>>, vector<24x128xf32>
    tpu.vector_store %arg13[%c280, %c0_13], %15 {strides = array<i32>} : memref<304x128xf32, #tpu.memory_space<vmem>>, vector<24x128xf32>,
    %c24 = arith.constant 24 : index
    %c0_14 = arith.constant 0 : index
    %18 = vector.load %arg13[%c24, %c0_14] : memref<304x128xf32, #tpu.memory_space<vmem>>, vector<256x128xf32>
    tpu.vector_store %arg13[%c24, %c0_14], %14 {strides = array<i32>} : memref<304x128xf32, #tpu.memory_space<vmem>>, vector<256x128xf32>,
    %c0_15 = arith.constant 0 : index
    %c0_16 = arith.constant 0 : index
    %19 = vector.load %arg2[%c0_15, %c0_16] : memref<256x128xi32, #tpu.memory_space<vmem>>, vector<256x128xi32>
    %c0_17 = arith.constant 0 : index
    %c0_18 = arith.constant 0 : index
    %20 = vector.load %arg6[%c0_17, %c0_18] : memref<9x128xf32, #tpu.memory_space<vmem>>, vector<9x128xf32>
    %c7 = arith.constant 7 : index
    %c0_19 = arith.constant 0 : index
    %21 = vector.load %arg13[%c7, %c0_19] : memref<304x128xf32, #tpu.memory_space<vmem>>, vector<256x128xf32>
    %c1_i32 = arith.constant 1 : i32
    %22 = vector.broadcast %c1_i32 : i32 to vector<256x128xi32>
    %23 = arith.cmpi sge, %19, %22 : vector<256x128xi32>
    %cst_20 = arith.constant 0.000000e+00 : f32
    %24 = vector.broadcast %cst_20 : f32 to vector<256x128xf32>
    %25 = arith.select %23, %21, %24 : vector<256x128xi1>, vector<256x128xf32>
    %26 = vector.extract_strided_slice %20 {offsets = [0, 0], sizes = [1, 128], strides = [1, 1]} : vector<9x128xf32> to vector<1x128xf32>
    %27 = vector.broadcast %26 : vector<1x128xf32> to vector<256x128xf32>
    %28 = arith.mulf %25, %27 : vector<256x128xf32>
    %c8 = arith.constant 8 : index
    %c0_21 = arith.constant 0 : index
    %29 = vector.load %arg13[%c8, %c0_21] : memref<304x128xf32, #tpu.memory_space<vmem>>, vector<256x128xf32>
    %30 = vector.extract_strided_slice %20 {offsets = [1, 0], sizes = [1, 128], strides = [1, 1]} : vector<9x128xf32> to vector<1x128xf32>
    %31 = vector.broadcast %30 : vector<1x128xf32> to vector<256x128xf32>
    %32 = arith.mulf %29, %31 : vector<256x128xf32>
    %33 = arith.addf %28, %32 : vector<256x128xf32>
    %c9 = arith.constant 9 : index
    %c0_22 = arith.constant 0 : index
    %34 = vector.load %arg13[%c9, %c0_22] : memref<304x128xf32, #tpu.memory_space<vmem>>, vector<256x128xf32>
    %c15_i32 = arith.constant 15 : i32
    %35 = vector.broadcast %c15_i32 : i32 to vector<256x128xi32>
    %36 = arith.cmpi slt, %19, %35 : vector<256x128xi32>
    %cst_23 = arith.constant 0.000000e+00 : f32
    %37 = vector.broadcast %cst_23 : f32 to vector<256x128xf32>
    %38 = arith.select %36, %34, %37 : vector<256x128xi1>, vector<256x128xf32>
    %39 = vector.extract_strided_slice %20 {offsets = [2, 0], sizes = [1, 128], strides = [1, 1]} : vector<9x128xf32> to vector<1x128xf32>
    %40 = vector.broadcast %39 : vector<1x128xf32> to vector<256x128xf32>
    %41 = arith.mulf %38, %40 : vector<256x128xf32>
    %42 = arith.addf %33, %41 : vector<256x128xf32>
    %c23 = arith.constant 23 : index
    %c0_24 = arith.constant 0 : index
    %43 = vector.load %arg13[%c23, %c0_24] : memref<304x128xf32, #tpu.memory_space<vmem>>, vector<256x128xf32>
    %c1_i32_25 = arith.constant 1 : i32
    %44 = vector.broadcast %c1_i32_25 : i32 to vector<256x128xi32>
    %45 = arith.cmpi sge, %19, %44 : vector<256x128xi32>
    %cst_26 = arith.constant 0.000000e+00 : f32
    %46 = vector.broadcast %cst_26 : f32 to vector<256x128xf32>
    %47 = arith.select %45, %43, %46 : vector<256x128xi1>, vector<256x128xf32>
    %48 = vector.extract_strided_slice %20 {offsets = [3, 0], sizes = [1, 128], strides = [1, 1]} : vector<9x128xf32> to vector<1x128xf32>
    %49 = vector.broadcast %48 : vector<1x128xf32> to vector<256x128xf32>
    %50 = arith.mulf %47, %49 : vector<256x128xf32>
    %51 = arith.addf %42, %50 : vector<256x128xf32>
    %c24_27 = arith.constant 24 : index
    %c0_28 = arith.constant 0 : index
    %52 = vector.load %arg13[%c24_27, %c0_28] : memref<304x128xf32, #tpu.memory_space<vmem>>, vector<256x128xf32>
    %53 = vector.extract_strided_slice %20 {offsets = [4, 0], sizes = [1, 128], strides = [1, 1]} : vector<9x128xf32> to vector<1x128xf32>
    %54 = vector.broadcast %53 : vector<1x128xf32> to vector<256x128xf32>
    %55 = arith.mulf %52, %54 : vector<256x128xf32>
    %56 = arith.addf %51, %55 : vector<256x128xf32>
    %c25 = arith.constant 25 : index
    %c0_29 = arith.constant 0 : index
    %57 = vector.load %arg13[%c25, %c0_29] : memref<304x128xf32, #tpu.memory_space<vmem>>, vector<256x128xf32>
    %c15_i32_30 = arith.constant 15 : i32
    %58 = vector.broadcast %c15_i32_30 : i32 to vector<256x128xi32>
    %59 = arith.cmpi slt, %19, %58 : vector<256x128xi32>
    %cst_31 = arith.constant 0.000000e+00 : f32
    %60 = vector.broadcast %cst_31 : f32 to vector<256x128xf32>
    %61 = arith.select %59, %57, %60 : vector<256x128xi1>, vector<256x128xf32>
    %62 = vector.extract_strided_slice %20 {offsets = [5, 0], sizes = [1, 128], strides = [1, 1]} : vector<9x128xf32> to vector<1x128xf32>
    %63 = vector.broadcast %62 : vector<1x128xf32> to vector<256x128xf32>
    %64 = arith.mulf %61, %63 : vector<256x128xf32>
    %65 = arith.addf %56, %64 : vector<256x128xf32>
    %c39 = arith.constant 39 : index
    %c0_32 = arith.constant 0 : index
    %66 = vector.load %arg13[%c39, %c0_32] : memref<304x128xf32, #tpu.memory_space<vmem>>, vector<256x128xf32>
    %c1_i32_33 = arith.constant 1 : i32
    %67 = vector.broadcast %c1_i32_33 : i32 to vector<256x128xi32>
    %68 = arith.cmpi sge, %19, %67 : vector<256x128xi32>
    %cst_34 = arith.constant 0.000000e+00 : f32
    %69 = vector.broadcast %cst_34 : f32 to vector<256x128xf32>
    %70 = arith.select %68, %66, %69 : vector<256x128xi1>, vector<256x128xf32>
    %71 = vector.extract_strided_slice %20 {offsets = [6, 0], sizes = [1, 128], strides = [1, 1]} : vector<9x128xf32> to vector<1x128xf32>
    %72 = vector.broadcast %71 : vector<1x128xf32> to vector<256x128xf32>
    %73 = arith.mulf %70, %72 : vector<256x128xf32>
    %74 = arith.addf %65, %73 : vector<256x128xf32>
    %c40 = arith.constant 40 : index
    %c0_35 = arith.constant 0 : index
    %75 = vector.load %arg13[%c40, %c0_35] : memref<304x128xf32, #tpu.memory_space<vmem>>, vector<256x128xf32>
    %76 = vector.extract_strided_slice %20 {offsets = [7, 0], sizes = [1, 128], strides = [1, 1]} : vector<9x128xf32> to vector<1x128xf32>
    %77 = vector.broadcast %76 : vector<1x128xf32> to vector<256x128xf32>
    %78 = arith.mulf %75, %77 : vector<256x128xf32>
    %79 = arith.addf %74, %78 : vector<256x128xf32>
    %c41 = arith.constant 41 : index
    %c0_36 = arith.constant 0 : index
    %80 = vector.load %arg13[%c41, %c0_36] : memref<304x128xf32, #tpu.memory_space<vmem>>, vector<256x128xf32>
    %c15_i32_37 = arith.constant 15 : i32
    %81 = vector.broadcast %c15_i32_37 : i32 to vector<256x128xi32>
    %82 = arith.cmpi slt, %19, %81 : vector<256x128xi32>
    %cst_38 = arith.constant 0.000000e+00 : f32
    %83 = vector.broadcast %cst_38 : f32 to vector<256x128xf32>
    %84 = arith.select %82, %80, %83 : vector<256x128xi1>, vector<256x128xf32>
    %85 = vector.extract_strided_slice %20 {offsets = [8, 0], sizes = [1, 128], strides = [1, 1]} : vector<9x128xf32> to vector<1x128xf32>
    %86 = vector.broadcast %85 : vector<1x128xf32> to vector<256x128xf32>
    %87 = arith.mulf %84, %86 : vector<256x128xf32>
    %88 = arith.addf %79, %87 : vector<256x128xf32>
    %c0_39 = arith.constant 0 : index
    %c0_40 = arith.constant 0 : index
    %89 = vector.load %arg7[%c0_39, %c0_40] : memref<1x128xf32, #tpu.memory_space<vmem>>, vector<1x128xf32>
    %90 = vector.broadcast %89 : vector<1x128xf32> to vector<256x128xf32>
    %91 = arith.mulf %88, %90 : vector<256x128xf32>
    %c0_41 = arith.constant 0 : index
    %c0_42 = arith.constant 0 : index
    %92 = vector.load %arg8[%c0_41, %c0_42] : memref<1x128xf32, #tpu.memory_space<vmem>>, vector<1x128xf32>
    %93 = vector.broadcast %92 : vector<1x128xf32> to vector<256x128xf32>
    %94 = arith.addf %91, %93 : vector<256x128xf32>
    %cst_43 = arith.constant 0.000000e+00 : f32
    %cst_44 = arith.constant 6.000000e+00 : f32
    %95 = vector.broadcast %cst_43 : f32 to vector<256x128xf32>
    %96 = arith.maximumf %95, %94 : vector<256x128xf32>
    %97 = vector.broadcast %cst_44 : f32 to vector<256x128xf32>
    %98 = arith.minimumf %97, %96 : vector<256x128xf32>
    %99 = arith.truncf %98 : vector<256x128xf32> to vector<256x128xbf16>
    %c0_45 = arith.constant 0 : index
    %c0_46 = arith.constant 0 : index
    %100 = vector.load %arg9[%c0_45, %c0_46] : memref<128x128xbf16, #tpu.memory_space<vmem>>, vector<128x128xbf16>
    %cst_47 = arith.constant dense<0.000000e+00> : vector<256x128xf32>
    %101 = tpu.matmul %99, %100, %cst_47 {dimension_numbers = #tpu.dot_dimension_numbers<[1], [0], [0], [1], [0, 0, 1, 1], [], []>} : vector<256x128xbf16>, vector<128x128xbf16>, vector<256x128xf32> -> vector<256x128xf32>
    %c0_48 = arith.constant 0 : index
    %c0_49 = arith.constant 0 : index
    %102 = vector.load %arg10[%c0_48, %c0_49] : memref<1x128xf32, #tpu.memory_space<vmem>>, vector<1x128xf32>
    %103 = vector.broadcast %102 : vector<1x128xf32> to vector<256x128xf32>
    %104 = arith.mulf %101, %103 : vector<256x128xf32>
    %c0_50 = arith.constant 0 : index
    %c0_51 = arith.constant 0 : index
    %105 = vector.load %arg11[%c0_50, %c0_51] : memref<1x128xf32, #tpu.memory_space<vmem>>, vector<1x128xf32>
    %106 = vector.broadcast %105 : vector<1x128xf32> to vector<256x128xf32>
    %107 = arith.addf %104, %106 : vector<256x128xf32>
    %108 = arith.addf %107, %1 : vector<256x128xf32>
    %c0_52 = arith.constant 0 : index
    %c0_53 = arith.constant 0 : index
    %c0_54 = arith.constant 0 : index
    %109 = vector.load %arg12[%c0_52, %c0_53, %c0_54] : memref<1x256x128xf32, #tpu.memory_space<vmem>>, vector<1x256x128xf32>
    %110 = vector.shape_cast %109 : vector<1x256x128xf32> to vector<256x128xf32>
    %111 = vector.shape_cast %108 : vector<256x128xf32> to vector<1x256x128xf32>
    tpu.vector_store %arg12[%c0_52, %c0_53, %c0_54], %111 {strides = array<i32>} : memref<1x256x128xf32, #tpu.memory_space<vmem>>, vector<1x256x128xf32>,
    return
  }
  func.func @transform_0(%arg0: i32) -> (i32, i32, i32) {
    %c0_i32 = arith.constant 0 : i32
    %c0_i32_0 = arith.constant 0 : i32
    %c0_i32_1 = arith.constant 0 : i32
    return %arg0, %c0_i32, %c0_i32_0 : i32, i32, i32
  }
  func.func @transform_1(%arg0: i32) -> (i32, i32) {
    %c0_i32 = arith.constant 0 : i32
    %c0_i32_0 = arith.constant 0 : i32
    %c0_i32_1 = arith.constant 0 : i32
    return %c0_i32, %c0_i32_0 : i32, i32
  }
  func.func @transform_2(%arg0: i32) -> (i32, i32) {
    %c0_i32 = arith.constant 0 : i32
    %c0_i32_0 = arith.constant 0 : i32
    %c0_i32_1 = arith.constant 0 : i32
    return %c0_i32, %c0_i32_0 : i32, i32
  }
  func.func @transform_3(%arg0: i32) -> (i32, i32) {
    %c0_i32 = arith.constant 0 : i32
    %c0_i32_0 = arith.constant 0 : i32
    %c0_i32_1 = arith.constant 0 : i32
    return %c0_i32, %c0_i32_0 : i32, i32
  }
  func.func @transform_4(%arg0: i32) -> (i32, i32) {
    %c0_i32 = arith.constant 0 : i32
    %c0_i32_0 = arith.constant 0 : i32
    %c0_i32_1 = arith.constant 0 : i32
    return %c0_i32, %c0_i32_0 : i32, i32
  }
  func.func @transform_5(%arg0: i32) -> (i32, i32) {
    %c0_i32 = arith.constant 0 : i32
    %c0_i32_0 = arith.constant 0 : i32
    %c0_i32_1 = arith.constant 0 : i32
    return %c0_i32, %c0_i32_0 : i32, i32
  }
  func.func @transform_6(%arg0: i32) -> (i32, i32) {
    %c0_i32 = arith.constant 0 : i32
    %c0_i32_0 = arith.constant 0 : i32
    %c0_i32_1 = arith.constant 0 : i32
    return %c0_i32, %c0_i32_0 : i32, i32
  }
  func.func @transform_7(%arg0: i32) -> (i32, i32) {
    %c0_i32 = arith.constant 0 : i32
    %c0_i32_0 = arith.constant 0 : i32
    %c0_i32_1 = arith.constant 0 : i32
    return %c0_i32, %c0_i32_0 : i32, i32
  }
  func.func @transform_8(%arg0: i32) -> (i32, i32) {
    %c0_i32 = arith.constant 0 : i32
    %c0_i32_0 = arith.constant 0 : i32
    %c0_i32_1 = arith.constant 0 : i32
    return %c0_i32, %c0_i32_0 : i32, i32
  }
  func.func @transform_9(%arg0: i32) -> (i32, i32) {
    %c0_i32 = arith.constant 0 : i32
    %c0_i32_0 = arith.constant 0 : i32
    %c0_i32_1 = arith.constant 0 : i32
    return %c0_i32, %c0_i32_0 : i32, i32
  }
  func.func @transform_10(%arg0: i32) -> (i32, i32) {
    %c0_i32 = arith.constant 0 : i32
    %c0_i32_0 = arith.constant 0 : i32
    %c0_i32_1 = arith.constant 0 : i32
    return %c0_i32, %c0_i32_0 : i32, i32
  }
  func.func @transform_11(%arg0: i32) -> (i32, i32, i32) {
    %c0_i32 = arith.constant 0 : i32
    %c0_i32_0 = arith.constant 0 : i32
    %c0_i32_1 = arith.constant 0 : i32
    return %arg0, %c0_i32, %c0_i32_0 : i32, i32, i32
  }
}

</mosaic_0001>

<llo_original>
// kernel: tpu_custom_call.1
$region0: #{tpu_custom_call.1}
  #allocation0 [shape = 'u32[]', space=smem, size = 0x4, offset = 0x4, fixed_abs, tag = 'smem constant byte address 0x4 - core index']
  #allocation1 [shape = 'u32[144,128]{1,0:T(1,128)}', space=vmem, size = 0x12000, scoped, tag = 'internal scratch']
  #allocation2 [shape = 'f32[304,128]{1,0:T(8,128)}', space=vmem, size = 0x26000, scoped, tag = 'scratch operand']
  %s0 = inlined_call_operand.hbm [shape: f32[2,256,128], index: 0, kind: input, shape index: {}]
  %s1 = inlined_call_operand.hbm [shape: s32[256,128], index: 1, kind: input, shape index: {}]
  %s2 = inlined_call_operand.hbm [shape: bf16[128,128], index: 2, kind: input, shape index: {}]
  %s3 = inlined_call_operand.vmem [shape: f32[1,128], index: 3, kind: input, shape index: {}]
  %s4 = inlined_call_operand.vmem [shape: f32[1,128], index: 4, kind: input, shape index: {}]
  %s5 = inlined_call_operand.hbm [shape: f32[9,128], index: 5, kind: input, shape index: {}]
  %s6 = inlined_call_operand.vmem [shape: f32[1,128], index: 6, kind: input, shape index: {}]
  %s7 = inlined_call_operand.vmem [shape: f32[1,128], index: 7, kind: input, shape index: {}]
  %s8 = inlined_call_operand.hbm [shape: bf16[128,128], index: 8, kind: input, shape index: {}]
  %s9 = inlined_call_operand.vmem [shape: f32[1,128], index: 9, kind: input, shape index: {}]
  %s10 = inlined_call_operand.vmem [shape: f32[1,128], index: 10, kind: input, shape index: {}]
  %s11 = inlined_call_operand.hbm [shape: f32[2,256,128], index: 11, kind: output, shape index: {}]
  %s12 = sld [smem:[#allocation0]]
  $region97: #{tpu_custom_call.1} parent=0
    _
  %s14 = ssub.s32 1, %s12
  %s15 = scalar_select 0, %s14, %s12
  $region1: #{tpu_custom_call.1} parent=0
    #allocation3 [shape = 'u8[262144]{0}', space=vmem, size = 0x40000, scoped, tag = 'input window, operand 0']
    #allocation4 [shape = 's32[2]{0}', space=sflag, size = 0x8, scoped, tag = 'scoped memory for tpu_custom_call.1']
    #allocation5 [shape = 's32[2]{0}', space=sflag, size = 0x8, scoped, tag = 'scoped memory for tpu_custom_call.1']
    #allocation6 [shape = 'u8[131072]{0}', space=vmem, size = 0x20000, scoped, tag = 'input window, operand 1, single buffered']
    #allocation7 [shape = 's32[1]{0}', space=sflag, size = 0x4, scoped, tag = 'scoped memory for tpu_custom_call.1']
    #allocation8 [shape = 'u8[32768]{0}', space=vmem, size = 0x8000, scoped, tag = 'input window, operand 2, single buffered']
    #allocation9 [shape = 'u8[8192]{0}', space=vmem, size = 0x2000, scoped, tag = 'input window, operand 5, single buffered']
    #allocation10 [shape = 's32[1]{0}', space=sflag, size = 0x4, scoped, tag = 'scoped memory for tpu_custom_call.1']
    #allocation11 [shape = 'u8[32768]{0}', space=vmem, size = 0x8000, scoped, tag = 'input window, operand 8, single buffered']
    #allocation12 [shape = 'u8[262144]{0}', space=vmem, size = 0x40000, scoped, tag = 'output window, operand 0']
    %16 = vsyncpa [#allocation4], 0
    %s17 = scalar_lea.sflag [#allocation4], 1
    %18 = vsyncpa %s17, 0
    %19 = vsyncpa [#allocation7], 0
    %20 = vsyncpa [#allocation10], 0
    %21 = vsyncpa [#allocation5], 0
    %s22 = scalar_lea.sflag [#allocation5], 1
    %23 = vsyncpa %s22, 0
    loop: start=0, step=1, limit=4
    $region2: #{tpu_custom_call.1} parent=1 // loop_pre_header
      _
    $region3: #{tpu_custom_call.1} parent=1 // loop_header
      %s25 = sphi 0, %s29
      %p26 = scmp.ge.s32.totalorder %s25, 4
      %s35 = sphi 0, %s37
      %s38 = sphi 0, %s35
      %s39 = sphi 0, %s38
      %s55 = sphi 0, %s39
      %s59 = sphi 0, %s59
      %s61 = sphi 0, %s59
      %s62 = sphi 0, %s61
      %s76 = sphi 0, %s62
      %s80 = sphi 0, %s80
      %s82 = sphi 0, %s80
      %s83 = sphi 0, %s82
      %s97 = sphi 0, %s83
      %s101 = sphi 0, %s101
      %s103 = sphi 0, %s101
      %s104 = sphi 0, %s103
      %s118 = sphi 0, %s104
      %s122 = sphi 0, %s122
      %s124 = sphi 0, %s122
      %s125 = sphi 0, %s124
      %s139 = sphi 0, %s125
      %s143 = sphi 0, %s143
      %s145 = sphi 0, %s143
      %s146 = sphi 0, %s145
      %s160 = sphi 0, %s146
      %s164 = sphi 0, %s164
      %s166 = sphi 0, %s164
      %s167 = sphi 0, %s166
      %s181 = sphi 0, %s167
      %s185 = sphi 0, %s185
      %s187 = sphi 0, %s185
      %s188 = sphi 0, %s187
      %s202 = sphi 0, %s188
      %s206 = sphi 0, %s206
      %s208 = sphi 0, %s206
      %s209 = sphi 0, %s208
      %s223 = sphi 0, %s209
      %s227 = sphi 0, %s227
      %s229 = sphi 0, %s227
      %s230 = sphi 0, %s229
      %s244 = sphi 0, %s230
      %s248 = sphi 0, %s248
      %s250 = sphi 0, %s248
      %s251 = sphi 0, %s250
      %s265 = sphi 0, %s251
      %s271 = sphi 0, %s273
      %s274 = sphi 0, %s271
      %s275 = sphi 0, %s274
      %s291 = sphi 0, %s275
    $region4: #{tpu_custom_call.1} parent=1 // loop_header_branch
      %28 = sbr.rel (%p26) target = $region8
    $region5: #{tpu_custom_call.1} parent=1 // loop_body
      %s30 = ssub.s32 %s25, 1
      %s31 = ssub.s32 %s25, 2
      %s32 = sadd.s32 %s25, 1
      %s33 = ssub.s32 %s25, %s32
      %p34 = scmp.eq.s32.totalorder %s33, 0
      %s36 = sadd.s32 %s35, 1
      %s37 = scalar_select %p34, %s35, %s36
      %p40 = pneg %p34
      %p41 = scmp.eq.s32.totalorder %s25, 1
      %p42 = por %p40, %p41
      %p43 = scmp.ne.s32.totalorder %s35, %s38
      %p44 = scmp.eq.s32.totalorder %s25, 0
      %p45 = por %p43, %p44
      %p46 = scmp.ne.s32.totalorder %s35, %s38
      %p47 = scmp.eq.s32.totalorder %s30, 1
      %p48 = por %p46, %p47
      %p49 = scmp.ne.s32.totalorder %s38, %s39
      %p50 = scmp.eq.s32.totalorder %s30, 0
      %p51 = por %p49, %p50
      %p52 = scmp.ne.s32.totalorder %s38, %s39
      %p53 = scmp.eq.s32.totalorder %s31, 1
      %p54 = por %p52, %p53
      %p56 = scmp.ne.s32.totalorder %s39, %s55
      %p57 = scmp.eq.s32.totalorder %s31, 0
      %p58 = por %p56, %p57
      %s60 = sadd.s32 %s59, 1
      %p63 = scmp.eq.s32.totalorder %s25, 1
      %p64 = scmp.ne.s32.totalorder %s59, %s61
      %p65 = scmp.eq.s32.totalorder %s25, 0
      %p66 = por %p64, %p65
      %p67 = scmp.ne.s32.totalorder %s59, %s61
      %p68 = scmp.eq.s32.totalorder %s30, 1
      %p69 = por %p67, %p68
      %p70 = scmp.ne.s32.totalorder %s61, %s62
      %p71 = scmp.eq.s32.totalorder %s30, 0
      %p72 = por %p70, %p71
      %p73 = scmp.ne.s32.totalorder %s61, %s62
      %p74 = scmp.eq.s32.totalorder %s31, 1
      %p75 = por %p73, %p74
      %p77 = scmp.ne.s32.totalorder %s62, %s76
      %p78 = scmp.eq.s32.totalorder %s31, 0
      %p79 = por %p77, %p78
      %s81 = sadd.s32 %s80, 1
      %p84 = scmp.eq.s32.totalorder %s25, 1
      %p85 = scmp.ne.s32.totalorder %s80, %s82
      %p86 = scmp.eq.s32.totalorder %s25, 0
      %p87 = por %p85, %p86
      %p88 = scmp.ne.s32.totalorder %s80, %s82
      %p89 = scmp.eq.s32.totalorder %s30, 1
      %p90 = por %p88, %p89
      %p91 = scmp.ne.s32.totalorder %s82, %s83
      %p92 = scmp.eq.s32.totalorder %s30, 0
      %p93 = por %p91, %p92
      %p94 = scmp.ne.s32.totalorder %s82, %s83
      %p95 = scmp.eq.s32.totalorder %s31, 1
      %p96 = por %p94, %p95
      %p98 = scmp.ne.s32.totalorder %s83, %s97
      %p99 = scmp.eq.s32.totalorder %s31, 0
      %p100 = por %p98, %p99
      %s102 = sadd.s32 %s101, 1
      %p105 = scmp.eq.s32.totalorder %s25, 1
      %p106 = scmp.ne.s32.totalorder %s101, %s103
      %p107 = scmp.eq.s32.totalorder %s25, 0
      %p108 = por %p106, %p107
      %p109 = scmp.ne.s32.totalorder %s101, %s103
      %p110 = scmp.eq.s32.totalorder %s30, 1
      %p111 = por %p109, %p110
      %p112 = scmp.ne.s32.totalorder %s103, %s104
      %p113 = scmp.eq.s32.totalorder %s30, 0
      %p114 = por %p112, %p113
      %p115 = scmp.ne.s32.totalorder %s103, %s104
      %p116 = scmp.eq.s32.totalorder %s31, 1
      %p117 = por %p115, %p116
      %p119 = scmp.ne.s32.totalorder %s104, %s118
      %p120 = scmp.eq.s32.totalorder %s31, 0
      %p121 = por %p119, %p120
      %s123 = sadd.s32 %s122, 1
      %p126 = scmp.eq.s32.totalorder %s25, 1
      %p127 = scmp.ne.s32.totalorder %s122, %s124
      %p128 = scmp.eq.s32.totalorder %s25, 0
      %p129 = por %p127, %p128
      %p130 = scmp.ne.s32.totalorder %s122, %s124
      %p131 = scmp.eq.s32.totalorder %s30, 1
      %p132 = por %p130, %p131
      %p133 = scmp.ne.s32.totalorder %s124, %s125
      %p134 = scmp.eq.s32.totalorder %s30, 0
      %p135 = por %p133, %p134
      %p136 = scmp.ne.s32.totalorder %s124, %s125
      %p137 = scmp.eq.s32.totalorder %s31, 1
      %p138 = por %p136, %p137
      %p140 = scmp.ne.s32.totalorder %s125, %s139
      %p141 = scmp.eq.s32.totalorder %s31, 0
      %p142 = por %p140, %p141
      %s144 = sadd.s32 %s143, 1
      %p147 = scmp.eq.s32.totalorder %s25, 1
      %p148 = scmp.ne.s32.totalorder %s143, %s145
      %p149 = scmp.eq.s32.totalorder %s25, 0
      %p150 = por %p148, %p149
      %p151 = scmp.ne.s32.totalorder %s143, %s145
      %p152 = scmp.eq.s32.totalorder %s30, 1
      %p153 = por %p151, %p152
      %p154 = scmp.ne.s32.totalorder %s145, %s146
      %p155 = scmp.eq.s32.totalorder %s30, 0
      %p156 = por %p154, %p155
      %p157 = scmp.ne.s32.totalorder %s145, %s146
      %p158 = scmp.eq.s32.totalorder %s31, 1
      %p159 = por %p157, %p158
      %p161 = scmp.ne.s32.totalorder %s146, %s160
      %p162 = scmp.eq.s32.totalorder %s31, 0
      %p163 = por %p161, %p162
      %s165 = sadd.s32 %s164, 1
      %p168 = scmp.eq.s32.totalorder %s25, 1
      %p169 = scmp.ne.s32.totalorder %s164, %s166
      %p170 = scmp.eq.s32.totalorder %s25, 0
      %p171 = por %p169, %p170
      %p172 = scmp.ne.s32.totalorder %s164, %s166
      %p173 = scmp.eq.s32.totalorder %s30, 1
      %p174 = por %p172, %p173
      %p175 = scmp.ne.s32.totalorder %s166, %s167
      %p176 = scmp.eq.s32.totalorder %s30, 0
      %p177 = por %p175, %p176
      %p178 = scmp.ne.s32.totalorder %s166, %s167
      %p179 = scmp.eq.s32.totalorder %s31, 1
      %p180 = por %p178, %p179
      %p182 = scmp.ne.s32.totalorder %s167, %s181
      %p183 = scmp.eq.s32.totalorder %s31, 0
      %p184 = por %p182, %p183
      %s186 = sadd.s32 %s185, 1
      %p189 = scmp.eq.s32.totalorder %s25, 1
      %p190 = scmp.ne.s32.totalorder %s185, %s187
      %p191 = scmp.eq.s32.totalorder %s25, 0
      %p192 = por %p190, %p191
      %p193 = scmp.ne.s32.totalorder %s185, %s187
      %p194 = scmp.eq.s32.totalorder %s30, 1
      %p195 = por %p193, %p194
      %p196 = scmp.ne.s32.totalorder %s187, %s188
      %p197 = scmp.eq.s32.totalorder %s30, 0
      %p198 = por %p196, %p197
      %p199 = scmp.ne.s32.totalorder %s187, %s188
      %p200 = scmp.eq.s32.totalorder %s31, 1
      %p201 = por %p199, %p200
      %p203 = scmp.ne.s32.totalorder %s188, %s202
      %p204 = scmp.eq.s32.totalorder %s31, 0
      %p205 = por %p203, %p204
      %s207 = sadd.s32 %s206, 1
      %p210 = scmp.eq.s32.totalorder %s25, 1
      %p211 = scmp.ne.s32.totalorder %s206, %s208
      %p212 = scmp.eq.s32.totalorder %s25, 0
      %p213 = por %p211, %p212
      %p214 = scmp.ne.s32.totalorder %s206, %s208
      %p215 = scmp.eq.s32.totalorder %s30, 1
      %p216 = por %p214, %p215
      %p217 = scmp.ne.s32.totalorder %s208, %s209
      %p218 = scmp.eq.s32.totalorder %s30, 0
      %p219 = por %p217, %p218
      %p220 = scmp.ne.s32.totalorder %s208, %s209
      %p221 = scmp.eq.s32.totalorder %s31, 1
      %p222 = por %p220, %p221
      %p224 = scmp.ne.s32.totalorder %s209, %s223
      %p225 = scmp.eq.s32.totalorder %s31, 0
      %p226 = por %p224, %p225
      %s228 = sadd.s32 %s227, 1
      %p231 = scmp.eq.s32.totalorder %s25, 1
      %p232 = scmp.ne.s32.totalorder %s227, %s229
      %p233 = scmp.eq.s32.totalorder %s25, 0
      %p234 = por %p232, %p233
      %p235 = scmp.ne.s32.totalorder %s227, %s229
      %p236 = scmp.eq.s32.totalorder %s30, 1
      %p237 = por %p235, %p236
      %p238 = scmp.ne.s32.totalorder %s229, %s230
      %p239 = scmp.eq.s32.totalorder %s30, 0
      %p240 = por %p238, %p239
      %p241 = scmp.ne.s32.totalorder %s229, %s230
      %p242 = scmp.eq.s32.totalorder %s31, 1
      %p243 = por %p241, %p242
      %p245 = scmp.ne.s32.totalorder %s230, %s244
      %p246 = scmp.eq.s32.totalorder %s31, 0
      %p247 = por %p245, %p246
      %s249 = sadd.s32 %s248, 1
      %p252 = scmp.eq.s32.totalorder %s25, 1
      %p253 = scmp.ne.s32.totalorder %s248, %s250
      %p254 = scmp.eq.s32.totalorder %s25, 0
      %p255 = por %p253, %p254
      %p256 = scmp.ne.s32.totalorder %s248, %s250
      %p257 = scmp.eq.s32.totalorder %s30, 1
      %p258 = por %p256, %p257
      %p259 = scmp.ne.s32.totalorder %s250, %s251
      %p260 = scmp.eq.s32.totalorder %s30, 0
      %p261 = por %p259, %p260
      %p262 = scmp.ne.s32.totalorder %s250, %s251
      %p263 = scmp.eq.s32.totalorder %s31, 1
      %p264 = por %p262, %p263
      %p266 = scmp.ne.s32.totalorder %s251, %s265
      %p267 = scmp.eq.s32.totalorder %s31, 0
      %p268 = por %p266, %p267
      %s269 = ssub.s32 %s25, %s32
      %p270 = scmp.eq.s32.totalorder %s269, 0
      %s272 = sadd.s32 %s271, 1
      %s273 = scalar_select %p270, %s271, %s272
      %p276 = pneg %p270
      %p277 = scmp.eq.s32.totalorder %s25, 1
      %p278 = por %p276, %p277
      %p279 = scmp.ne.s32.totalorder %s271, %s274
      %p280 = scmp.eq.s32.totalorder %s25, 0
      %p281 = por %p279, %p280
      %p282 = scmp.ne.s32.totalorder %s271, %s274
      %p283 = scmp.eq.s32.totalorder %s30, 1
      %p284 = por %p282, %p283
      %p285 = scmp.ne.s32.totalorder %s274, %s275
      %p286 = scmp.eq.s32.totalorder %s30, 0
      %p287 = por %p285, %p286
      %p288 = scmp.ne.s32.totalorder %s274, %s275
      %p289 = scmp.eq.s32.totalorder %s31, 1
      %p290 = por %p288, %p289
      %p292 = scmp.ne.s32.totalorder %s275, %s291
      %p293 = scmp.eq.s32.totalorder %s31, 0
      %p294 = por %p292, %p293
      %p295 = scmp.le.s32.totalorder 1, %s25
      %p296 = scmp.lt.s32.totalorder %s25, 3
      %p297 = pnand %p295, %p296
      %p298 = pneg %p297
      // Predicated region
      $region9: #{tpu_custom_call.1} parent=5 // pred_check
        _
      $region10: #{tpu_custom_call.1} parent=5 // pred_check_branch
        %300 = sbr.rel (%p297) target = $region12
      $region11: #{tpu_custom_call.1} parent=5 // pred_region
        %s301 = ssub.s32 %s25, 1
        // Predicated region
        $region13: #{tpu_custom_call.1} parent=11 // pred_check
          %p302 = pneg %p72
        $region14: #{tpu_custom_call.1} parent=11 // pred_check_branch
          %304 = sbr.rel (%p302) target = $region16
        $region15: #{tpu_custom_call.1} parent=11 // pred_region
          %s306 = ssub.s32 4096, 4096
          %307 = vsyncadd [#allocation7], %s306
          %s308 = sshll.u32 [#allocation6], 4
          %s309 = int_to_ptr.vmem [resolvable:$true] %s308
          %314 = dma.hbm_to_vmem [thread:$0]  %s1, 4096, %s309, [#allocation7], 128, 128, 8
        $region16: #{tpu_custom_call.1} parent=11 // pred_fallthru
          _
        // Predicated region
        $region17: #{tpu_custom_call.1} parent=11 // pred_check
          %p315 = pneg %p93
        $region18: #{tpu_custom_call.1} parent=11 // pred_check_branch
          %317 = sbr.rel (%p315) target = $region20
        $region19: #{tpu_custom_call.1} parent=11 // pred_region
          %s319 = ssub.s32 1024, 1024
          %320 = vsyncadd [#allocation7], %s319
          %s321 = sshll.u32 [#allocation8], 4
          %s322 = int_to_ptr.vmem [resolvable:$true] %s321
          %327 = dma.hbm_to_vmem [thread:$0]  %s2, 1024, %s322, [#allocation7], 64, 64, 4
        $region20: #{tpu_custom_call.1} parent=11 // pred_fallthru
          _
        // Predicated region
        $region21: #{tpu_custom_call.1} parent=11 // pred_check
          %p328 = pneg %p114
        $region22: #{tpu_custom_call.1} parent=11 // pred_check_branch
          %330 = sbr.rel (%p328) target = $region24
        $region23: #{tpu_custom_call.1} parent=11 // pred_region
          _
        $region24: #{tpu_custom_call.1} parent=11 // pred_fallthru
          _
        // Predicated region
        $region25: #{tpu_custom_call.1} parent=11 // pred_check
          %p331 = pneg %p135
        $region26: #{tpu_custom_call.1} parent=11 // pred_check_branch
          %333 = sbr.rel (%p331) target = $region28
        $region27: #{tpu_custom_call.1} parent=11 // pred_region
          _
        $region28: #{tpu_custom_call.1} parent=11 // pred_fallthru
          _
        // Predicated region
        $region29: #{tpu_custom_call.1} parent=11 // pred_check
          %p334 = pneg %p156
        $region30: #{tpu_custom_call.1} parent=11 // pred_check_branch
          %336 = sbr.rel (%p334) target = $region32
        $region31: #{tpu_custom_call.1} parent=11 // pred_region
          %s338 = ssub.s32 256, 256
          %339 = vsyncadd [#allocation10], %s338
          %s340 = sshll.u32 [#allocation9], 4
          %s341 = int_to_ptr.vmem [resolvable:$true] %s340
          %346 = dma.hbm_to_vmem [thread:$0]  %s5, 256, %s341, [#allocation10], 128, 128, 8
        $region32: #{tpu_custom_call.1} parent=11 // pred_fallthru
          _
        // Predicated region
        $region33: #{tpu_custom_call.1} parent=11 // pred_check
          %p347 = pneg %p177
        $region34: #{tpu_custom_call.1} parent=11 // pred_check_branch
          %349 = sbr.rel (%p347) target = $region36
        $region35: #{tpu_custom_call.1} parent=11 // pred_region
          _
        $region36: #{tpu_custom_call.1} parent=11 // pred_fallthru
          _
        // Predicated region
        $region37: #{tpu_custom_call.1} parent=11 // pred_check
          %p350 = pneg %p198
        $region38: #{tpu_custom_call.1} parent=11 // pred_check_branch
          %352 = sbr.rel (%p350) target = $region40
        $region39: #{tpu_custom_call.1} parent=11 // pred_region
          _
        $region40: #{tpu_custom_call.1} parent=11 // pred_fallthru
          _
        // Predicated region
        $region41: #{tpu_custom_call.1} parent=11 // pred_check
          %p353 = pneg %p219
        $region42: #{tpu_custom_call.1} parent=11 // pred_check_branch
          %355 = sbr.rel (%p353) target = $region44
        $region43: #{tpu_custom_call.1} parent=11 // pred_region
          %s357 = ssub.s32 1024, 1024
          %358 = vsyncadd [#allocation10], %s357
          %s359 = sshll.u32 [#allocation11], 4
          %s360 = int_to_ptr.vmem [resolvable:$true] %s359
          %365 = dma.hbm_to_vmem [thread:$0]  %s8, 1024, %s360, [#allocation10], 64, 64, 4
        $region44: #{tpu_custom_call.1} parent=11 // pred_fallthru
          _
        // Predicated region
        $region45: #{tpu_custom_call.1} parent=11 // pred_check
          %p366 = pneg %p240
        $region46: #{tpu_custom_call.1} parent=11 // pred_check_branch
          %368 = sbr.rel (%p366) target = $region48
        $region47: #{tpu_custom_call.1} parent=11 // pred_region
          _
        $region48: #{tpu_custom_call.1} parent=11 // pred_fallthru
          _
        // Predicated region
        $region49: #{tpu_custom_call.1} parent=11 // pred_check
          %p369 = pneg %p261
        $region50: #{tpu_custom_call.1} parent=11 // pred_check_branch
          %371 = sbr.rel (%p369) target = $region52
        $region51: #{tpu_custom_call.1} parent=11 // pred_region
          _
        $region52: #{tpu_custom_call.1} parent=11 // pred_fallthru
          _
      $region12: #{tpu_custom_call.1} parent=5 // pred_fallthru
        _
      %p372 = scmp.lt.s32.totalorder %s25, 2
      // Predicated region
      $region53: #{tpu_custom_call.1} parent=5 // pred_check
        %p373 = pneg %p372
      $region54: #{tpu_custom_call.1} parent=5 // pred_check_branch
        %375 = sbr.rel (%p373) target = $region56
      $region55: #{tpu_custom_call.1} parent=5 // pred_region
        // Predicated region
        $region57: #{tpu_custom_call.1} parent=55 // pred_check
          %p376 = pneg %p45
        $region58: #{tpu_custom_call.1} parent=55 // pred_check_branch
          %378 = sbr.rel (%p376) target = $region60
        $region59: #{tpu_custom_call.1} parent=55 // pred_region
          %s379 = sand.u32 %s35, 1
          %s380 = scalar_lea.sflag [#allocation4], %s379
          %s381 = sand.u32 %s35, 1
          %s382 = smul.addr %s381, 256
          %s383 = scalar_lea.vmem [#allocation3], %s382
          %s385 = ssub.s32 4096, 4096
          %386 = vsyncadd %s380, %s385
          %s387 = smul.addr %s25, 32
          %s388 = smul.addr %s387, 128
          %s389 = scalar_lea.hbm %s0, %s388
          %s390 = sshll.u32 %s383, 4
          %s391 = int_to_ptr.vmem [resolvable:$true] %s390
          %396 = dma.hbm_to_vmem [thread:$0]  %s389, 4096, %s391, %s380, 128, 128, 8
        $region60: #{tpu_custom_call.1} parent=55 // pred_fallthru
          _
      $region56: #{tpu_custom_call.1} parent=5 // pred_fallthru
        _
      %p397 = scmp.le.s32.totalorder 1, %s25
      %p398 = scmp.lt.s32.totalorder %s25, 3
      %p399 = pnand %p397, %p398
      %p400 = pneg %p399
      // Predicated region
      $region61: #{tpu_custom_call.1} parent=5 // pred_check
        _
      $region62: #{tpu_custom_call.1} parent=5 // pred_check_branch
        %402 = sbr.rel (%p399) target = $region64
      $region63: #{tpu_custom_call.1} parent=5 // pred_region
        %s403 = ssub.s32 %s25, 1
        %s404 = sand.u32 %s38, 1
        %s405 = scalar_lea.sflag [#allocation4], %s404
        %s406 = sand.u32 %s38, 1
        %s407 = smul.addr %s406, 256
        %s408 = scalar_lea.vmem [#allocation3], %s407
        // Predicated region
        $region65: #{tpu_custom_call.1} parent=63 // pred_check
          %p409 = pneg %p51
        $region66: #{tpu_custom_call.1} parent=63 // pred_check_branch
          %411 = sbr.rel (%p409) target = $region68
        $region67: #{tpu_custom_call.1} parent=63 // pred_region
          %412 = dma.done %s405, 4096
        $region68: #{tpu_custom_call.1} parent=63 // pred_fallthru
          _
        // Predicated region
        $region69: #{tpu_custom_call.1} parent=63 // pred_check
          %p413 = pneg %p72
        $region70: #{tpu_custom_call.1} parent=63 // pred_check_branch
          %415 = sbr.rel (%p413) target = $region72
        $region71: #{tpu_custom_call.1} parent=63 // pred_region
          %416 = dma.done [#allocation7], 4096
        $region72: #{tpu_custom_call.1} parent=63 // pred_fallthru
          _
        // Predicated region
        $region73: #{tpu_custom_call.1} parent=63 // pred_check
          %p417 = pneg %p93
        $region74: #{tpu_custom_call.1} parent=63 // pred_check_branch
          %419 = sbr.rel (%p417) target = $region76
        $region75: #{tpu_custom_call.1} parent=63 // pred_region
          %420 = dma.done [#allocation7], 1024
        $region76: #{tpu_custom_call.1} parent=63 // pred_fallthru
          _
        // Predicated region
        $region77: #{tpu_custom_call.1} parent=63 // pred_check
          %p421 = pneg %p156
        $region78: #{tpu_custom_call.1} parent=63 // pred_check_branch
          %423 = sbr.rel (%p421) target = $region80
        $region79: #{tpu_custom_call.1} parent=63 // pred_region
          %424 = dma.done [#allocation10], 256
        $region80: #{tpu_custom_call.1} parent=63 // pred_fallthru
          _
        // Predicated region
        $region81: #{tpu_custom_call.1} parent=63 // pred_check
          %p425 = pneg %p219
        $region82: #{tpu_custom_call.1} parent=63 // pred_check_branch
          %427 = sbr.rel (%p425) target = $region84
        $region83: #{tpu_custom_call.1} parent=63 // pred_region
          %428 = dma.done [#allocation10], 1024
        $region84: #{tpu_custom_call.1} parent=63 // pred_fallthru
          _
        %s429 = sand.u32 %s38, 1
        %s430 = scalar_lea.sflag [#allocation4], %s429
        %s431 = sand.u32 %s38, 1
        %s432 = smul.addr %s431, 256
        %s433 = scalar_lea.vmem [#allocation3], %s432
        %p434 = pneg %p51
        %p435 = pneg %p48
        %p436 = pneg %p72
        %p437 = pneg %p69
        %p438 = pneg %p93
        %p439 = pneg %p90
        %p440 = pneg %p114
        %p441 = pneg %p111
        %p442 = pneg %p135
        %p443 = pneg %p132
        %p444 = pneg %p156
        %p445 = pneg %p153
        %p446 = pneg %p177
        %p447 = pneg %p174
        %p448 = pneg %p198
        %p449 = pneg %p195
        %p450 = pneg %p219
        %p451 = pneg %p216
        %p452 = pneg %p240
        %p453 = pneg %p237
        %p454 = pneg %p261
        %p455 = pneg %p258
        %p456 = pneg %p287
        %p457 = pneg %p284
        %s458 = sand.u32 %s274, 1
        %s459 = scalar_lea.sflag [#allocation5], %s458
        %s460 = sand.u32 %s274, 1
        %s461 = smul.addr %s460, 256
        %s462 = scalar_lea.vmem [#allocation12], %s461
        %v464 = vld [vmem:[%s408] sm:$0xff]
        %v465 = vld [vmem:[%s408 + $0x8] sm:$0xff]
        %v466 = vld [vmem:[%s408 + $0x10] sm:$0xff]
        %v467 = vld [vmem:[%s408 + $0x18] sm:$0xff]
        %v468 = vld [vmem:[%s408 + $0x20] sm:$0xff]
        %v469 = vld [vmem:[%s408 + $0x28] sm:$0xff]
        %v470 = vld [vmem:[%s408 + $0x30] sm:$0xff]
        %v471 = vld [vmem:[%s408 + $0x38] sm:$0xff]
        %v472 = vld [vmem:[%s408 + $0x40] sm:$0xff]
        %v473 = vld [vmem:[%s408 + $0x48] sm:$0xff]
        %v474 = vld [vmem:[%s408 + $0x50] sm:$0xff]
        %v475 = vld [vmem:[%s408 + $0x58] sm:$0xff]
        %v476 = vld [vmem:[%s408 + $0x60] sm:$0xff]
        %v477 = vld [vmem:[%s408 + $0x68] sm:$0xff]
        %v478 = vld [vmem:[%s408 + $0x70] sm:$0xff]
        %v479 = vld [vmem:[%s408 + $0x78] sm:$0xff]
        %v480 = vld [vmem:[%s408 + $0x80] sm:$0xff]
        %v481 = vld [vmem:[%s408 + $0x88] sm:$0xff]
        %v482 = vld [vmem:[%s408 + $0x90] sm:$0xff]
        %v483 = vld [vmem:[%s408 + $0x98] sm:$0xff]
        %v484 = vld [vmem:[%s408 + $0xa0] sm:$0xff]
        %v485 = vld [vmem:[%s408 + $0xa8] sm:$0xff]
        %v486 = vld [vmem:[%s408 + $0xb0] sm:$0xff]
        %v487 = vld [vmem:[%s408 + $0xb8] sm:$0xff]
        %v488 = vld [vmem:[%s408 + $0xc0] sm:$0xff]
        %v489 = vld [vmem:[%s408 + $0xc8] sm:$0xff]
        %v490 = vld [vmem:[%s408 + $0xd0] sm:$0xff]
        %v491 = vld [vmem:[%s408 + $0xd8] sm:$0xff]
        %v492 = vld [vmem:[%s408 + $0xe0] sm:$0xff]
        %v493 = vld [vmem:[%s408 + $0xe8] sm:$0xff]
        %v494 = vld [vmem:[%s408 + $0xf0] sm:$0xff]
        %v495 = vld [vmem:[%s408 + $0xf8] sm:$0xff]
        %v496 = vpack.c.bf16 %v465, %v464
        %v497 = vpack.c.bf16 %v467, %v466
        %v498 = vpack.c.bf16 %v469, %v468
        %v499 = vpack.c.bf16 %v471, %v470
        %v500 = vpack.c.bf16 %v473, %v472
        %v501 = vpack.c.bf16 %v475, %v474
        %v502 = vpack.c.bf16 %v477, %v476
        %v503 = vpack.c.bf16 %v479, %v478
        %v504 = vpack.c.bf16 %v481, %v480
        %v505 = vpack.c.bf16 %v483, %v482
        %v506 = vpack.c.bf16 %v485, %v484
        %v507 = vpack.c.bf16 %v487, %v486
        %v508 = vpack.c.bf16 %v489, %v488
        %v509 = vpack.c.bf16 %v491, %v490
        %v510 = vpack.c.bf16 %v493, %v492
        %v511 = vpack.c.bf16 %v495, %v494
        %v512 = vld [vmem:[#allocation8] sm:$0xf]
        %v513 = vld [vmem:[#allocation8 + $0x4] sm:$0xf]
        %v514 = vld [vmem:[#allocation8 + $0x8] sm:$0xf]
        %v515 = vld [vmem:[#allocation8 + $0xc] sm:$0xf]
        %v516 = vld [vmem:[#allocation8 + $0x10] sm:$0xf]
        %v517 = vld [vmem:[#allocation8 + $0x14] sm:$0xf]
        %v518 = vld [vmem:[#allocation8 + $0x18] sm:$0xf]
        %v519 = vld [vmem:[#allocation8 + $0x1c] sm:$0xf]
        %v520 = vld [vmem:[#allocation8 + $0x20] sm:$0xf]
        %v521 = vld [vmem:[#allocation8 + $0x24] sm:$0xf]
        %v522 = vld [vmem:[#allocation8 + $0x28] sm:$0xf]
        %v523 = vld [vmem:[#allocation8 + $0x2c] sm:$0xf]
        %v524 = vld [vmem:[#allocation8 + $0x30] sm:$0xf]
        %v525 = vld [vmem:[#allocation8 + $0x34] sm:$0xf]
        %v526 = vld [vmem:[#allocation8 + $0x38] sm:$0xf]
        %v527 = vld [vmem:[#allocation8 + $0x3c] sm:$0xf]
        %v544 = vunpack.c.l.b16 %v512
        %v545 = vunpack.c.l.b16 %v513
        %v546 = vunpack.c.l.b16 %v514
        %v547 = vunpack.c.l.b16 %v515
        %v548 = vunpack.c.l.b16 %v516
        %v549 = vunpack.c.l.b16 %v517
        %v550 = vunpack.c.l.b16 %v518
        %v551 = vunpack.c.l.b16 %v519
        %v552 = vunpack.c.l.b16 %v520
        %v553 = vunpack.c.l.b16 %v521
        %v554 = vunpack.c.l.b16 %v522
        %v555 = vunpack.c.l.b16 %v523
        %v556 = vunpack.c.l.b16 %v524
        %v557 = vunpack.c.l.b16 %v525
        %v558 = vunpack.c.l.b16 %v526
        %v559 = vunpack.c.l.b16 %v527
        %v560 = vpack.c.b16 %v545, %v544
        %v561 = vpack.c.b16 %v547, %v546
        %v562 = vpack.c.b16 %v549, %v548
        %v563 = vpack.c.b16 %v551, %v550
        %v564 = vpack.c.b16 %v553, %v552
        %v565 = vpack.c.b16 %v555, %v554
        %v566 = vpack.c.b16 %v557, %v556
        %v567 = vpack.c.b16 %v559, %v558
        %576 = vmatprep.subr.bf16.mxu0 0
        %577 = vmatpush1.bf16.msra.mxu0 %v567
        %578 = vmatprep.subr.bf16.mxu0 0
        %579 = vmatpush1.bf16.msra.mxu0 %v566
        %580 = vmatprep.subr.bf16.mxu0 0
        %581 = vmatpush1.bf16.msra.mxu0 %v565
        %582 = vmatprep.subr.bf16.mxu0 0
        %583 = vmatpush1.bf16.msra.mxu0 %v564
        %584 = vmatprep.subr.bf16.mxu0 0
        %585 = vmatpush1.bf16.msra.mxu0 %v563
        %586 = vmatprep.subr.bf16.mxu0 0
        %587 = vmatpush1.bf16.msra.mxu0 %v562
        %588 = vmatprep.subr.bf16.mxu0 0
        %589 = vmatpush1.bf16.msra.mxu0 %v561
        %590 = vmatprep.subr.bf16.mxu0 0
        %591 = vmatpush1.bf16.msra.mxu0 %v560
        %592 = vmatprep.subr.bf16.mxu0 0
        %593 = vmatpush2.bf16.msra.mxu0 0
        %594 = vmatprep.subr.bf16.mxu0 0
        %595 = vmatpush2.bf16.msra.mxu0 0
        %596 = vmatprep.subr.bf16.mxu0 0
        %597 = vmatpush2.bf16.msra.mxu0 0
        %598 = vmatprep.subr.bf16.mxu0 0
        %599 = vmatpush2.bf16.msra.mxu0 0
        %600 = vmatprep.subr.bf16.mxu0 0
        %601 = vmatpush2.bf16.msra.mxu0 0
        %602 = vmatprep.subr.bf16.mxu0 0
        %603 = vmatpush2.bf16.msra.mxu0 0
        %604 = vmatprep.subr.bf16.mxu0 0
        %605 = vmatpush2.bf16.msra.mxu0 0
        %606 = vmatprep.subr.bf16.mxu0 0
        %607 = vmatpush2.bf16.msra.mxu0 0
        %608 = vmatprep.mubr.bf16.mxu0 0
        %609 = vmatmul.mubr.bf16.gmra.mxu0 %v496
        %v610 = vpop.f32.mrf.mxu0
        %v611 = vadd.f32 0.0, %v610
        %v612 = vpop.f32.mrf.mxu0
        %v613 = vpop.f32.mrf.mxu0
        %v614 = vadd.f32 0.0, %v613
        %v615 = vpop.f32.mrf.mxu0
        %616 = vmatprep.mubr.bf16.mxu0 0
        %617 = vmatmul.mubr.bf16.gmra.mxu0 %v497
        %v618 = vpop.f32.mrf.mxu0
        %v619 = vadd.f32 0.0, %v618
        %v620 = vpop.f32.mrf.mxu0
        %v621 = vpop.f32.mrf.mxu0
        %v622 = vadd.f32 0.0, %v621
        %v623 = vpop.f32.mrf.mxu0
        %624 = vmatprep.mubr.bf16.mxu0 0
        %625 = vmatmul.mubr.bf16.gmra.mxu0 %v498
        %v626 = vpop.f32.mrf.mxu0
        %v627 = vadd.f32 0.0, %v626
        %v628 = vpop.f32.mrf.mxu0
        %v629 = vpop.f32.mrf.mxu0
        %v630 = vadd.f32 0.0, %v629
        %v631 = vpop.f32.mrf.mxu0
        %632 = vmatprep.mubr.bf16.mxu0 0
        %633 = vmatmul.mubr.bf16.gmra.mxu0 %v499
        %v634 = vpop.f32.mrf.mxu0
        %v635 = vadd.f32 0.0, %v634
        %v636 = vpop.f32.mrf.mxu0
        %v637 = vpop.f32.mrf.mxu0
        %v638 = vadd.f32 0.0, %v637
        %v639 = vpop.f32.mrf.mxu0
        %640 = vmatprep.mubr.bf16.mxu0 0
        %641 = vmatmul.mubr.bf16.gmra.mxu0 %v500
        %v642 = vpop.f32.mrf.mxu0
        %v643 = vadd.f32 0.0, %v642
        %v644 = vpop.f32.mrf.mxu0
        %v645 = vpop.f32.mrf.mxu0
        %v646 = vadd.f32 0.0, %v645
        %v647 = vpop.f32.mrf.mxu0
        %648 = vmatprep.mubr.bf16.mxu0 0
        %649 = vmatmul.mubr.bf16.gmra.mxu0 %v501
        %v650 = vpop.f32.mrf.mxu0
        %v651 = vadd.f32 0.0, %v650
        %v652 = vpop.f32.mrf.mxu0
        %v653 = vpop.f32.mrf.mxu0
        %v654 = vadd.f32 0.0, %v653
        %v655 = vpop.f32.mrf.mxu0
        %656 = vmatprep.mubr.bf16.mxu0 0
        %657 = vmatmul.mubr.bf16.gmra.mxu0 %v502
        %v658 = vpop.f32.mrf.mxu0
        %v659 = vadd.f32 0.0, %v658
        %v660 = vpop.f32.mrf.mxu0
        %v661 = vpop.f32.mrf.mxu0
        %v662 = vadd.f32 0.0, %v661
        %v663 = vpop.f32.mrf.mxu0
        %664 = vmatprep.mubr.bf16.mxu0 0
        %665 = vmatmul.mubr.bf16.gmra.mxu0 %v503
        %v666 = vpop.f32.mrf.mxu0
        %v667 = vadd.f32 0.0, %v666
        %v668 = vpop.f32.mrf.mxu0
        %v669 = vpop.f32.mrf.mxu0
        %v670 = vadd.f32 0.0, %v669
        %v671 = vpop.f32.mrf.mxu0
        %672 = vmatprep.mubr.bf16.mxu0 0
        %673 = vmatmul.mubr.bf16.gmra.mxu0 %v504
        %v674 = vpop.f32.mrf.mxu0
        %v675 = vadd.f32 0.0, %v674
        %v676 = vpop.f32.mrf.mxu0
        %v677 = vpop.f32.mrf.mxu0
        %v678 = vadd.f32 0.0, %v677
        %v679 = vpop.f32.mrf.mxu0
        %680 = vmatprep.mubr.bf16.mxu0 0
        %681 = vmatmul.mubr.bf16.gmra.mxu0 %v505
        %v682 = vpop.f32.mrf.mxu0
        %v683 = vadd.f32 0.0, %v682
        %v684 = vpop.f32.mrf.mxu0
        %v685 = vpop.f32.mrf.mxu0
        %v686 = vadd.f32 0.0, %v685
        %v687 = vpop.f32.mrf.mxu0
        %688 = vmatprep.mubr.bf16.mxu0 0
        %689 = vmatmul.mubr.bf16.gmra.mxu0 %v506
        %v690 = vpop.f32.mrf.mxu0
        %v691 = vadd.f32 0.0, %v690
        %v692 = vpop.f32.mrf.mxu0
        %v693 = vpop.f32.mrf.mxu0
        %v694 = vadd.f32 0.0, %v693
        %v695 = vpop.f32.mrf.mxu0
        %696 = vmatprep.mubr.bf16.mxu0 0
        %697 = vmatmul.mubr.bf16.gmra.mxu0 %v507
        %v698 = vpop.f32.mrf.mxu0
        %v699 = vadd.f32 0.0, %v698
        %v700 = vpop.f32.mrf.mxu0
        %v701 = vpop.f32.mrf.mxu0
        %v702 = vadd.f32 0.0, %v701
        %v703 = vpop.f32.mrf.mxu0
        %704 = vmatprep.mubr.bf16.mxu0 0
        %705 = vmatmul.mubr.bf16.gmra.mxu0 %v508
        %v706 = vpop.f32.mrf.mxu0
        %v707 = vadd.f32 0.0, %v706
        %v708 = vpop.f32.mrf.mxu0
        %v709 = vpop.f32.mrf.mxu0
        %v710 = vadd.f32 0.0, %v709
        %v711 = vpop.f32.mrf.mxu0
        %712 = vmatprep.mubr.bf16.mxu0 0
        %713 = vmatmul.mubr.bf16.gmra.mxu0 %v509
        %v714 = vpop.f32.mrf.mxu0
        %v715 = vadd.f32 0.0, %v714
        %v716 = vpop.f32.mrf.mxu0
        %v717 = vpop.f32.mrf.mxu0
        %v718 = vadd.f32 0.0, %v717
        %v719 = vpop.f32.mrf.mxu0
        %720 = vmatprep.mubr.bf16.mxu0 0
        %721 = vmatmul.mubr.bf16.gmra.mxu0 %v510
        %v722 = vpop.f32.mrf.mxu0
        %v723 = vadd.f32 0.0, %v722
        %v724 = vpop.f32.mrf.mxu0
        %v725 = vpop.f32.mrf.mxu0
        %v726 = vadd.f32 0.0, %v725
        %v727 = vpop.f32.mrf.mxu0
        %728 = vmatprep.mubr.bf16.mxu0 0
        %729 = vmatmul.mubr.bf16.gmra.mxu0 %v511
        %v730 = vpop.f32.mrf.mxu0
        %v731 = vadd.f32 0.0, %v730
        %v732 = vpop.f32.mrf.mxu0
        %v733 = vpop.f32.mrf.mxu0
        %v734 = vadd.f32 0.0, %v733
        %v735 = vpop.f32.mrf.mxu0
        %736 = vdwg.mxu0
        %v737 = vld [vmem:[%s3] sm:$0x1]
        %v739 = vlaneseq
        %v740 = vshrl.u32 %v739, 7
        %v741 = vsub.s32 0, %v740
        %v742 = vrot.slane %v737, %v741
        %v744 = vmul.f32 %v611, %v742
        %v745 = vmul.f32 %v614, %v742
        %v746 = vmul.f32 %v619, %v742
        %v747 = vmul.f32 %v622, %v742
        %v748 = vmul.f32 %v627, %v742
        %v749 = vmul.f32 %v630, %v742
        %v750 = vmul.f32 %v635, %v742
        %v751 = vmul.f32 %v638, %v742
        %v752 = vmul.f32 %v643, %v742
        %v753 = vmul.f32 %v646, %v742
        %v754 = vmul.f32 %v651, %v742
        %v755 = vmul.f32 %v654, %v742
        %v756 = vmul.f32 %v659, %v742
        %v757 = vmul.f32 %v662, %v742
        %v758 = vmul.f32 %v667, %v742
        %v759 = vmul.f32 %v670, %v742
        %v760 = vmul.f32 %v675, %v742
        %v761 = vmul.f32 %v678, %v742
        %v762 = vmul.f32 %v683, %v742
        %v763 = vmul.f32 %v686, %v742
        %v764 = vmul.f32 %v691, %v742
        %v765 = vmul.f32 %v694, %v742
        %v766 = vmul.f32 %v699, %v742
        %v767 = vmul.f32 %v702, %v742
        %v768 = vmul.f32 %v707, %v742
        %v769 = vmul.f32 %v710, %v742
        %v770 = vmul.f32 %v715, %v742
        %v771 = vmul.f32 %v718, %v742
        %v772 = vmul.f32 %v723, %v742
        %v773 = vmul.f32 %v726, %v742
        %v774 = vmul.f32 %v731, %v742
        %v775 = vmul.f32 %v734, %v742
        %v776 = vld [vmem:[%s4] sm:$0x1]
        %v778 = vlaneseq
        %v779 = vshrl.u32 %v778, 7
        %v780 = vsub.s32 0, %v779
        %v781 = vrot.slane %v776, %v780
        %v783 = vadd.f32 %v744, %v781
        %v784 = vadd.f32 %v745, %v781
        %v785 = vadd.f32 %v746, %v781
        %v786 = vadd.f32 %v747, %v781
        %v787 = vadd.f32 %v748, %v781
        %v788 = vadd.f32 %v749, %v781
        %v789 = vadd.f32 %v750, %v781
        %v790 = vadd.f32 %v751, %v781
        %v791 = vadd.f32 %v752, %v781
        %v792 = vadd.f32 %v753, %v781
        %v793 = vadd.f32 %v754, %v781
        %v794 = vadd.f32 %v755, %v781
        %v795 = vadd.f32 %v756, %v781
        %v796 = vadd.f32 %v757, %v781
        %v797 = vadd.f32 %v758, %v781
        %v798 = vadd.f32 %v759, %v781
        %v799 = vadd.f32 %v760, %v781
        %v800 = vadd.f32 %v761, %v781
        %v801 = vadd.f32 %v762, %v781
        %v802 = vadd.f32 %v763, %v781
        %v803 = vadd.f32 %v764, %v781
        %v804 = vadd.f32 %v765, %v781
        %v805 = vadd.f32 %v766, %v781
        %v806 = vadd.f32 %v767, %v781
        %v807 = vadd.f32 %v768, %v781
        %v808 = vadd.f32 %v769, %v781
        %v809 = vadd.f32 %v770, %v781
        %v810 = vadd.f32 %v771, %v781
        %v811 = vadd.f32 %v772, %v781
        %v812 = vadd.f32 %v773, %v781
        %v813 = vadd.f32 %v774, %v781
        %v814 = vadd.f32 %v775, %v781
        %v815 = vmax.f32 %v783, 0.0
        %v816 = vmax.f32 %v784, 0.0
        %v817 = vmax.f32 %v785, 0.0
        %v818 = vmax.f32 %v786, 0.0
        %v819 = vmax.f32 %v787, 0.0
        %v820 = vmax.f32 %v788, 0.0
        %v821 = vmax.f32 %v789, 0.0
        %v822 = vmax.f32 %v790, 0.0
        %v823 = vmax.f32 %v791, 0.0
        %v824 = vmax.f32 %v792, 0.0
        %v825 = vmax.f32 %v793, 0.0
        %v826 = vmax.f32 %v794, 0.0
        %v827 = vmax.f32 %v795, 0.0
        %v828 = vmax.f32 %v796, 0.0
        %v829 = vmax.f32 %v797, 0.0
        %v830 = vmax.f32 %v798, 0.0
        %v831 = vmax.f32 %v799, 0.0
        %v832 = vmax.f32 %v800, 0.0
        %v833 = vmax.f32 %v801, 0.0
        %v834 = vmax.f32 %v802, 0.0
        %v835 = vmax.f32 %v803, 0.0
        %v836 = vmax.f32 %v804, 0.0
        %v837 = vmax.f32 %v805, 0.0
        %v838 = vmax.f32 %v806, 0.0
        %v839 = vmax.f32 %v807, 0.0
        %v840 = vmax.f32 %v808, 0.0
        %v841 = vmax.f32 %v809, 0.0
        %v842 = vmax.f32 %v810, 0.0
        %v843 = vmax.f32 %v811, 0.0
        %v844 = vmax.f32 %v812, 0.0
        %v845 = vmax.f32 %v813, 0.0
        %v846 = vmax.f32 %v814, 0.0
        %v847 = vmin.f32 %v815, 6.0
        %v848 = vmin.f32 %v816, 6.0
        %v849 = vmin.f32 %v817, 6.0
        %v850 = vmin.f32 %v818, 6.0
        %v851 = vmin.f32 %v819, 6.0
        %v852 = vmin.f32 %v820, 6.0
        %v853 = vmin.f32 %v821, 6.0
        %v854 = vmin.f32 %v822, 6.0
        %v855 = vmin.f32 %v823, 6.0
        %v856 = vmin.f32 %v824, 6.0
        %v857 = vmin.f32 %v825, 6.0
        %v858 = vmin.f32 %v826, 6.0
        %v859 = vmin.f32 %v827, 6.0
        %v860 = vmin.f32 %v828, 6.0
        %v861 = vmin.f32 %v829, 6.0
        %v862 = vmin.f32 %v830, 6.0
        %v863 = vmin.f32 %v831, 6.0
        %v864 = vmin.f32 %v832, 6.0
        %v865 = vmin.f32 %v833, 6.0
        %v866 = vmin.f32 %v834, 6.0
        %v867 = vmin.f32 %v835, 6.0
        %v868 = vmin.f32 %v836, 6.0
        %v869 = vmin.f32 %v837, 6.0
        %v870 = vmin.f32 %v838, 6.0
        %v871 = vmin.f32 %v839, 6.0
        %v872 = vmin.f32 %v840, 6.0
        %v873 = vmin.f32 %v841, 6.0
        %v874 = vmin.f32 %v842, 6.0
        %v875 = vmin.f32 %v843, 6.0
        %v876 = vmin.f32 %v844, 6.0
        %v877 = vmin.f32 %v845, 6.0
        %v878 = vmin.f32 %v846, 6.0
        %879 = vst [vmem:[#allocation2] sm:$0xff] 0.0
        %880 = vst [vmem:[#allocation2 + $0x8] sm:$0xff] 0.0
        %881 = vst [vmem:[#allocation2 + $0x10] sm:$0xff] 0.0
        %882 = vst [vmem:[#allocation2 + $0x118] sm:$0xff] 0.0
        %883 = vst [vmem:[#allocation2 + $0x120] sm:$0xff] 0.0
        %884 = vst [vmem:[#allocation2 + $0x128] sm:$0xff] 0.0
        %885 = vst [vmem:[#allocation2 + $0x18] sm:$0xff] %v847
        %886 = vst [vmem:[#allocation2 + $0x20] sm:$0xff] %v848
        %887 = vst [vmem:[#allocation2 + $0x28] sm:$0xff] %v849
        %888 = vst [vmem:[#allocation2 + $0x30] sm:$0xff] %v850
        %889 = vst [vmem:[#allocation2 + $0x38] sm:$0xff] %v851
        %890 = vst [vmem:[#allocation2 + $0x40] sm:$0xff] %v852
        %891 = vst [vmem:[#allocation2 + $0x48] sm:$0xff] %v853
        %892 = vst [vmem:[#allocation2 + $0x50] sm:$0xff] %v854
        %893 = vst [vmem:[#allocation2 + $0x58] sm:$0xff] %v855
        %894 = vst [vmem:[#allocation2 + $0x60] sm:$0xff] %v856
        %895 = vst [vmem:[#allocation2 + $0x68] sm:$0xff] %v857
        %896 = vst [vmem:[#allocation2 + $0x70] sm:$0xff] %v858
        %897 = vst [vmem:[#allocation2 + $0x78] sm:$0xff] %v859
        %898 = vst [vmem:[#allocation2 + $0x80] sm:$0xff] %v860
        %899 = vst [vmem:[#allocation2 + $0x88] sm:$0xff] %v861
        %900 = vst [vmem:[#allocation2 + $0x90] sm:$0xff] %v862
        %901 = vst [vmem:[#allocation2 + $0x98] sm:$0xff] %v863
        %902 = vst [vmem:[#allocation2 + $0xa0] sm:$0xff] %v864
        %903 = vst [vmem:[#allocation2 + $0xa8] sm:$0xff] %v865
        %904 = vst [vmem:[#allocation2 + $0xb0] sm:$0xff] %v866
        %905 = vst [vmem:[#allocation2 + $0xb8] sm:$0xff] %v867
        %906 = vst [vmem:[#allocation2 + $0xc0] sm:$0xff] %v868
        %907 = vst [vmem:[#allocation2 + $0xc8] sm:$0xff] %v869
        %908 = vst [vmem:[#allocation2 + $0xd0] sm:$0xff] %v870
        %909 = vst [vmem:[#allocation2 + $0xd8] sm:$0xff] %v871
        %910 = vst [vmem:[#allocation2 + $0xe0] sm:$0xff] %v872
        %911 = vst [vmem:[#allocation2 + $0xe8] sm:$0xff] %v873
        %912 = vst [vmem:[#allocation2 + $0xf0] sm:$0xff] %v874
        %913 = vst [vmem:[#allocation2 + $0xf8] sm:$0xff] %v875
        %914 = vst [vmem:[#allocation2 + $0x100] sm:$0xff] %v876
        %915 = vst [vmem:[#allocation2 + $0x108] sm:$0xff] %v877
        %916 = vst [vmem:[#allocation2 + $0x110] sm:$0xff] %v878
        %v917 = vld [vmem:[#allocation6] sm:$0xff]
        %v918 = vld [vmem:[#allocation6 + $0x8] sm:$0xff]
        %v919 = vld [vmem:[#allocation6 + $0x10] sm:$0xff]
        %v920 = vld [vmem:[#allocation6 + $0x18] sm:$0xff]
        %v921 = vld [vmem:[#allocation6 + $0x20] sm:$0xff]
        %v922 = vld [vmem:[#allocation6 + $0x28] sm:$0xff]
        %v923 = vld [vmem:[#allocation6 + $0x30] sm:$0xff]
        %v924 = vld [vmem:[#allocation6 + $0x38] sm:$0xff]
        %v925 = vld [vmem:[#allocation6 + $0x40] sm:$0xff]
        %v926 = vld [vmem:[#allocation6 + $0x48] sm:$0xff]
        %v927 = vld [vmem:[#allocation6 + $0x50] sm:$0xff]
        %v928 = vld [vmem:[#allocation6 + $0x58] sm:$0xff]
        %v929 = vld [vmem:[#allocation6 + $0x60] sm:$0xff]
        %v930 = vld [vmem:[#allocation6 + $0x68] sm:$0xff]
        %v931 = vld [vmem:[#allocation6 + $0x70] sm:$0xff]
        %v932 = vld [vmem:[#allocation6 + $0x78] sm:$0xff]
        %v933 = vld [vmem:[#allocation6 + $0x80] sm:$0xff]
        %v934 = vld [vmem:[#allocation6 + $0x88] sm:$0xff]
        %v935 = vld [vmem:[#allocation6 + $0x90] sm:$0xff]
        %v936 = vld [vmem:[#allocation6 + $0x98] sm:$0xff]
        %v937 = vld [vmem:[#allocation6 + $0xa0] sm:$0xff]
        %v938 = vld [vmem:[#allocation6 + $0xa8] sm:$0xff]
        %v939 = vld [vmem:[#allocation6 + $0xb0] sm:$0xff]
        %v940 = vld [vmem:[#allocation6 + $0xb8] sm:$0xff]
        %v941 = vld [vmem:[#allocation6 + $0xc0] sm:$0xff]
        %v942 = vld [vmem:[#allocation6 + $0xc8] sm:$0xff]
        %v943 = vld [vmem:[#allocation6 + $0xd0] sm:$0xff]
        %v944 = vld [vmem:[#allocation6 + $0xd8] sm:$0xff]
        %v945 = vld [vmem:[#allocation6 + $0xe0] sm:$0xff]
        %v946 = vld [vmem:[#allocation6 + $0xe8] sm:$0xff]
        %v947 = vld [vmem:[#allocation6 + $0xf0] sm:$0xff]
        %v948 = vld [vmem:[#allocation6 + $0xf8] sm:$0xff]
        %v949 = vld [vmem:[#allocation9] sm:$0xff]
        %v950 = vld [vmem:[#allocation9 + $0x8] sm:$0x1]
        %v951 = vld [vmem:[#allocation2 + $0x7] sm:$0xff]
        %v952 = vld [vmem:[#allocation2 + $0xf] sm:$0xff]
        %v953 = vld [vmem:[#allocation2 + $0x17] sm:$0xff]
        %v954 = vld [vmem:[#allocation2 + $0x1f] sm:$0xff]
        %v955 = vld [vmem:[#allocation2 + $0x27] sm:$0xff]
        %v956 = vld [vmem:[#allocation2 + $0x2f] sm:$0xff]
        %v957 = vld [vmem:[#allocation2 + $0x37] sm:$0xff]
        %v958 = vld [vmem:[#allocation2 + $0x3f] sm:$0xff]
        %v959 = vld [vmem:[#allocation2 + $0x47] sm:$0xff]
        %v960 = vld [vmem:[#allocation2 + $0x4f] sm:$0xff]
        %v961 = vld [vmem:[#allocation2 + $0x57] sm:$0xff]
        %v962 = vld [vmem:[#allocation2 + $0x5f] sm:$0xff]
        %v963 = vld [vmem:[#allocation2 + $0x67] sm:$0xff]
        %v964 = vld [vmem:[#allocation2 + $0x6f] sm:$0xff]
        %v965 = vld [vmem:[#allocation2 + $0x77] sm:$0xff]
        %v966 = vld [vmem:[#allocation2 + $0x7f] sm:$0xff]
        %v967 = vld [vmem:[#allocation2 + $0x87] sm:$0xff]
        %v968 = vld [vmem:[#allocation2 + $0x8f] sm:$0xff]
        %v969 = vld [vmem:[#allocation2 + $0x97] sm:$0xff]
        %v970 = vld [vmem:[#allocation2 + $0x9f] sm:$0xff]
        %v971 = vld [vmem:[#allocation2 + $0xa7] sm:$0xff]
        %v972 = vld [vmem:[#allocation2 + $0xaf] sm:$0xff]
        %v973 = vld [vmem:[#allocation2 + $0xb7] sm:$0xff]
        %v974 = vld [vmem:[#allocation2 + $0xbf] sm:$0xff]
        %v975 = vld [vmem:[#allocation2 + $0xc7] sm:$0xff]
        %v976 = vld [vmem:[#allocation2 + $0xcf] sm:$0xff]
        %v977 = vld [vmem:[#allocation2 + $0xd7] sm:$0xff]
        %v978 = vld [vmem:[#allocation2 + $0xdf] sm:$0xff]
        %v979 = vld [vmem:[#allocation2 + $0xe7] sm:$0xff]
        %v980 = vld [vmem:[#allocation2 + $0xef] sm:$0xff]
        %v981 = vld [vmem:[#allocation2 + $0xf7] sm:$0xff]
        %v982 = vld [vmem:[#allocation2 + $0xff] sm:$0xff]
        %vm983 = vcmp.ge.s32.totalorder %v917, 1
        %vm984 = vcmp.ge.s32.totalorder %v918, 1
        %vm985 = vcmp.ge.s32.totalorder %v919, 1
        %vm986 = vcmp.ge.s32.totalorder %v920, 1
        %vm987 = vcmp.ge.s32.totalorder %v921, 1
        %vm988 = vcmp.ge.s32.totalorder %v922, 1
        %vm989 = vcmp.ge.s32.totalorder %v923, 1
        %vm990 = vcmp.ge.s32.totalorder %v924, 1
        %vm991 = vcmp.ge.s32.totalorder %v925, 1
        %vm992 = vcmp.ge.s32.totalorder %v926, 1
        %vm993 = vcmp.ge.s32.totalorder %v927, 1
        %vm994 = vcmp.ge.s32.totalorder %v928, 1
        %vm995 = vcmp.ge.s32.totalorder %v929, 1
        %vm996 = vcmp.ge.s32.totalorder %v930, 1
        %vm997 = vcmp.ge.s32.totalorder %v931, 1
        %vm998 = vcmp.ge.s32.totalorder %v932, 1
        %vm999 = vcmp.ge.s32.totalorder %v933, 1
        %vm1000 = vcmp.ge.s32.totalorder %v934, 1
        %vm1001 = vcmp.ge.s32.totalorder %v935, 1
        %vm1002 = vcmp.ge.s32.totalorder %v936, 1
        %vm1003 = vcmp.ge.s32.totalorder %v937, 1
        %vm1004 = vcmp.ge.s32.totalorder %v938, 1
        %vm1005 = vcmp.ge.s32.totalorder %v939, 1
        %vm1006 = vcmp.ge.s32.totalorder %v940, 1
        %vm1007 = vcmp.ge.s32.totalorder %v941, 1
        %vm1008 = vcmp.ge.s32.totalorder %v942, 1
        %vm1009 = vcmp.ge.s32.totalorder %v943, 1
        %vm1010 = vcmp.ge.s32.totalorder %v944, 1
        %vm1011 = vcmp.ge.s32.totalorder %v945, 1
        %vm1012 = vcmp.ge.s32.totalorder %v946, 1
        %vm1013 = vcmp.ge.s32.totalorder %v947, 1
        %vm1014 = vcmp.ge.s32.totalorder %v948, 1
        %v1015 = vsel %vm983, %v951, 0.0
        %v1016 = vsel %vm984, %v952, 0.0
        %v1017 = vsel %vm985, %v953, 0.0
        %v1018 = vsel %vm986, %v954, 0.0
        %v1019 = vsel %vm987, %v955, 0.0
        %v1020 = vsel %vm988, %v956, 0.0
        %v1021 = vsel %vm989, %v957, 0.0
        %v1022 = vsel %vm990, %v958, 0.0
        %v1023 = vsel %vm991, %v959, 0.0
        %v1024 = vsel %vm992, %v960, 0.0
        %v1025 = vsel %vm993, %v961, 0.0
        %v1026 = vsel %vm994, %v962, 0.0
        %v1027 = vsel %vm995, %v963, 0.0
        %v1028 = vsel %vm996, %v964, 0.0
        %v1029 = vsel %vm997, %v965, 0.0
        %v1030 = vsel %vm998, %v966, 0.0
        %v1031 = vsel %vm999, %v967, 0.0
        %v1032 = vsel %vm1000, %v968, 0.0
        %v1033 = vsel %vm1001, %v969, 0.0
        %v1034 = vsel %vm1002, %v970, 0.0
        %v1035 = vsel %vm1003, %v971, 0.0
        %v1036 = vsel %vm1004, %v972, 0.0
        %v1037 = vsel %vm1005, %v973, 0.0
        %v1038 = vsel %vm1006, %v974, 0.0
        %v1039 = vsel %vm1007, %v975, 0.0
        %v1040 = vsel %vm1008, %v976, 0.0
        %v1041 = vsel %vm1009, %v977, 0.0
        %v1042 = vsel %vm1010, %v978, 0.0
        %v1043 = vsel %vm1011, %v979, 0.0
        %v1044 = vsel %vm1012, %v980, 0.0
        %v1045 = vsel %vm1013, %v981, 0.0
        %v1046 = vsel %vm1014, %v982, 0.0
        %v1047 = vlaneseq
        %v1048 = vshrl.u32 %v1047, 7
        %v1049 = vsub.s32 0, %v1048
        %v1050 = vrot.slane %v949, %v1049
        %v1051 = vmul.f32 %v1015, %v1050
        %v1052 = vmul.f32 %v1016, %v1050
        %v1053 = vmul.f32 %v1017, %v1050
        %v1054 = vmul.f32 %v1018, %v1050
        %v1055 = vmul.f32 %v1019, %v1050
        %v1056 = vmul.f32 %v1020, %v1050
        %v1057 = vmul.f32 %v1021, %v1050
        %v1058 = vmul.f32 %v1022, %v1050
        %v1059 = vmul.f32 %v1023, %v1050
        %v1060 = vmul.f32 %v1024, %v1050
        %v1061 = vmul.f32 %v1025, %v1050
        %v1062 = vmul.f32 %v1026, %v1050
        %v1063 = vmul.f32 %v1027, %v1050
        %v1064 = vmul.f32 %v1028, %v1050
        %v1065 = vmul.f32 %v1029, %v1050
        %v1066 = vmul.f32 %v1030, %v1050
        %v1067 = vmul.f32 %v1031, %v1050
        %v1068 = vmul.f32 %v1032, %v1050
        %v1069 = vmul.f32 %v1033, %v1050
        %v1070 = vmul.f32 %v1034, %v1050
        %v1071 = vmul.f32 %v1035, %v1050
        %v1072 = vmul.f32 %v1036, %v1050
        %v1073 = vmul.f32 %v1037, %v1050
        %v1074 = vmul.f32 %v1038, %v1050
        %v1075 = vmul.f32 %v1039, %v1050
        %v1076 = vmul.f32 %v1040, %v1050
        %v1077 = vmul.f32 %v1041, %v1050
        %v1078 = vmul.f32 %v1042, %v1050
        %v1079 = vmul.f32 %v1043, %v1050
        %v1080 = vmul.f32 %v1044, %v1050
        %v1081 = vmul.f32 %v1045, %v1050
        %v1082 = vmul.f32 %v1046, %v1050
        %v1083 = vld [vmem:[#allocation2 + $0x8] sm:$0xff]
        %v1084 = vld [vmem:[#allocation2 + $0x10] sm:$0xff]
        %v1085 = vld [vmem:[#allocation2 + $0x18] sm:$0xff]
        %v1086 = vld [vmem:[#allocation2 + $0x20] sm:$0xff]
        %v1087 = vld [vmem:[#allocation2 + $0x28] sm:$0xff]
        %v1088 = vld [vmem:[#allocation2 + $0x30] sm:$0xff]
        %v1089 = vld [vmem:[#allocation2 + $0x38] sm:$0xff]
        %v1090 = vld [vmem:[#allocation2 + $0x40] sm:$0xff]
        %v1091 = vld [vmem:[#allocation2 + $0x48] sm:$0xff]
        %v1092 = vld [vmem:[#allocation2 + $0x50] sm:$0xff]
        %v1093 = vld [vmem:[#allocation2 + $0x58] sm:$0xff]
        %v1094 = vld [vmem:[#allocation2 + $0x60] sm:$0xff]
        %v1095 = vld [vmem:[#allocation2 + $0x68] sm:$0xff]
        %v1096 = vld [vmem:[#allocation2 + $0x70] sm:$0xff]
        %v1097 = vld [vmem:[#allocation2 + $0x78] sm:$0xff]
        %v1098 = vld [vmem:[#allocation2 + $0x80] sm:$0xff]
        %v1099 = vld [vmem:[#allocation2 + $0x88] sm:$0xff]
        %v1100 = vld [vmem:[#allocation2 + $0x90] sm:$0xff]
        %v1101 = vld [vmem:[#allocation2 + $0x98] sm:$0xff]
        %v1102 = vld [vmem:[#allocation2 + $0xa0] sm:$0xff]
        %v1103 = vld [vmem:[#allocation2 + $0xa8] sm:$0xff]
        %v1104 = vld [vmem:[#allocation2 + $0xb0] sm:$0xff]
        %v1105 = vld [vmem:[#allocation2 + $0xb8] sm:$0xff]
        %v1106 = vld [vmem:[#allocation2 + $0xc0] sm:$0xff]
        %v1107 = vld [vmem:[#allocation2 + $0xc8] sm:$0xff]
        %v1108 = vld [vmem:[#allocation2 + $0xd0] sm:$0xff]
        %v1109 = vld [vmem:[#allocation2 + $0xd8] sm:$0xff]
        %v1110 = vld [vmem:[#allocation2 + $0xe0] sm:$0xff]
        %v1111 = vld [vmem:[#allocation2 + $0xe8] sm:$0xff]
        %v1112 = vld [vmem:[#allocation2 + $0xf0] sm:$0xff]
        %v1113 = vld [vmem:[#allocation2 + $0xf8] sm:$0xff]
        %v1114 = vld [vmem:[#allocation2 + $0x100] sm:$0xff]
        %v1115 = vlaneseq
        %v1116 = vshrl.u32 %v1115, 7
        %v1117 = vsub.s32 1, %v1116
        %v1118 = vrot.slane %v949, %v1117
        %v1119 = vmul.f32 %v1083, %v1118
        %v1120 = vmul.f32 %v1084, %v1118
        %v1121 = vmul.f32 %v1085, %v1118
        %v1122 = vmul.f32 %v1086, %v1118
        %v1123 = vmul.f32 %v1087, %v1118
        %v1124 = vmul.f32 %v1088, %v1118
        %v1125 = vmul.f32 %v1089, %v1118
        %v1126 = vmul.f32 %v1090, %v1118
        %v1127 = vmul.f32 %v1091, %v1118
        %v1128 = vmul.f32 %v1092, %v1118
        %v1129 = vmul.f32 %v1093, %v1118
        %v1130 = vmul.f32 %v1094, %v1118
        %v1131 = vmul.f32 %v1095, %v1118
        %v1132 = vmul.f32 %v1096, %v1118
        %v1133 = vmul.f32 %v1097, %v1118
        %v1134 = vmul.f32 %v1098, %v1118
        %v1135 = vmul.f32 %v1099, %v1118
        %v1136 = vmul.f32 %v1100, %v1118
        %v1137 = vmul.f32 %v1101, %v1118
        %v1138 = vmul.f32 %v1102, %v1118
        %v1139 = vmul.f32 %v1103, %v1118
        %v1140 = vmul.f32 %v1104, %v1118
        %v1141 = vmul.f32 %v1105, %v1118
        %v1142 = vmul.f32 %v1106, %v1118
        %v1143 = vmul.f32 %v1107, %v1118
        %v1144 = vmul.f32 %v1108, %v1118
        %v1145 = vmul.f32 %v1109, %v1118
        %v1146 = vmul.f32 %v1110, %v1118
        %v1147 = vmul.f32 %v1111, %v1118
        %v1148 = vmul.f32 %v1112, %v1118
        %v1149 = vmul.f32 %v1113, %v1118
        %v1150 = vmul.f32 %v1114, %v1118
        %v1151 = vadd.f32 %v1051, %v1119
        %v1152 = vadd.f32 %v1052, %v1120
        %v1153 = vadd.f32 %v1053, %v1121
        %v1154 = vadd.f32 %v1054, %v1122
        %v1155 = vadd.f32 %v1055, %v1123
        %v1156 = vadd.f32 %v1056, %v1124
        %v1157 = vadd.f32 %v1057, %v1125
        %v1158 = vadd.f32 %v1058, %v1126
        %v1159 = vadd.f32 %v1059, %v1127
        %v1160 = vadd.f32 %v1060, %v1128
        %v1161 = vadd.f32 %v1061, %v1129
        %v1162 = vadd.f32 %v1062, %v1130
        %v1163 = vadd.f32 %v1063, %v1131
        %v1164 = vadd.f32 %v1064, %v1132
        %v1165 = vadd.f32 %v1065, %v1133
        %v1166 = vadd.f32 %v1066, %v1134
        %v1167 = vadd.f32 %v1067, %v1135
        %v1168 = vadd.f32 %v1068, %v1136
        %v1169 = vadd.f32 %v1069, %v1137
        %v1170 = vadd.f32 %v1070, %v1138
        %v1171 = vadd.f32 %v1071, %v1139
        %v1172 = vadd.f32 %v1072, %v1140
        %v1173 = vadd.f32 %v1073, %v1141
        %v1174 = vadd.f32 %v1074, %v1142
        %v1175 = vadd.f32 %v1075, %v1143
        %v1176 = vadd.f32 %v1076, %v1144
        %v1177 = vadd.f32 %v1077, %v1145
        %v1178 = vadd.f32 %v1078, %v1146
        %v1179 = vadd.f32 %v1079, %v1147
        %v1180 = vadd.f32 %v1080, %v1148
        %v1181 = vadd.f32 %v1081, %v1149
        %v1182 = vadd.f32 %v1082, %v1150
        %v1183 = vld [vmem:[#allocation2 + $0x9] sm:$0xff]
        %v1184 = vld [vmem:[#allocation2 + $0x11] sm:$0xff]
        %v1185 = vld [vmem:[#allocation2 + $0x19] sm:$0xff]
        %v1186 = vld [vmem:[#allocation2 + $0x21] sm:$0xff]
        %v1187 = vld [vmem:[#allocation2 + $0x29] sm:$0xff]
        %v1188 = vld [vmem:[#allocation2 + $0x31] sm:$0xff]
        %v1189 = vld [vmem:[#allocation2 + $0x39] sm:$0xff]
        %v1190 = vld [vmem:[#allocation2 + $0x41] sm:$0xff]
        %v1191 = vld [vmem:[#allocation2 + $0x49] sm:$0xff]
        %v1192 = vld [vmem:[#allocation2 + $0x51] sm:$0xff]
        %v1193 = vld [vmem:[#allocation2 + $0x59] sm:$0xff]
        %v1194 = vld [vmem:[#allocation2 + $0x61] sm:$0xff]
        %v1195 = vld [vmem:[#allocation2 + $0x69] sm:$0xff]
        %v1196 = vld [vmem:[#allocation2 + $0x71] sm:$0xff]
        %v1197 = vld [vmem:[#allocation2 + $0x79] sm:$0xff]
        %v1198 = vld [vmem:[#allocation2 + $0x81] sm:$0xff]
        %v1199 = vld [vmem:[#allocation2 + $0x89] sm:$0xff]
        %v1200 = vld [vmem:[#allocation2 + $0x91] sm:$0xff]
        %v1201 = vld [vmem:[#allocation2 + $0x99] sm:$0xff]
        %v1202 = vld [vmem:[#allocation2 + $0xa1] sm:$0xff]
        %v1203 = vld [vmem:[#allocation2 + $0xa9] sm:$0xff]
        %v1204 = vld [vmem:[#allocation2 + $0xb1] sm:$0xff]
        %v1205 = vld [vmem:[#allocation2 + $0xb9] sm:$0xff]
        %v1206 = vld [vmem:[#allocation2 + $0xc1] sm:$0xff]
        %v1207 = vld [vmem:[#allocation2 + $0xc9] sm:$0xff]
        %v1208 = vld [vmem:[#allocation2 + $0xd1] sm:$0xff]
        %v1209 = vld [vmem:[#allocation2 + $0xd9] sm:$0xff]
        %v1210 = vld [vmem:[#allocation2 + $0xe1] sm:$0xff]
        %v1211 = vld [vmem:[#allocation2 + $0xe9] sm:$0xff]
        %v1212 = vld [vmem:[#allocation2 + $0xf1] sm:$0xff]
        %v1213 = vld [vmem:[#allocation2 + $0xf9] sm:$0xff]
        %v1214 = vld [vmem:[#allocation2 + $0x101] sm:$0xff]
        %vm1215 = vcmp.lt.s32.totalorder %v917, 15
        %vm1216 = vcmp.lt.s32.totalorder %v918, 15
        %vm1217 = vcmp.lt.s32.totalorder %v919, 15
        %vm1218 = vcmp.lt.s32.totalorder %v920, 15
        %vm1219 = vcmp.lt.s32.totalorder %v921, 15
        %vm1220 = vcmp.lt.s32.totalorder %v922, 15
        %vm1221 = vcmp.lt.s32.totalorder %v923, 15
        %vm1222 = vcmp.lt.s32.totalorder %v924, 15
        %vm1223 = vcmp.lt.s32.totalorder %v925, 15
        %vm1224 = vcmp.lt.s32.totalorder %v926, 15
        %vm1225 = vcmp.lt.s32.totalorder %v927, 15
        %vm1226 = vcmp.lt.s32.totalorder %v928, 15
        %vm1227 = vcmp.lt.s32.totalorder %v929, 15
        %vm1228 = vcmp.lt.s32.totalorder %v930, 15
        %vm1229 = vcmp.lt.s32.totalorder %v931, 15
        %vm1230 = vcmp.lt.s32.totalorder %v932, 15
        %vm1231 = vcmp.lt.s32.totalorder %v933, 15
        %vm1232 = vcmp.lt.s32.totalorder %v934, 15
        %vm1233 = vcmp.lt.s32.totalorder %v935, 15
        %vm1234 = vcmp.lt.s32.totalorder %v936, 15
        %vm1235 = vcmp.lt.s32.totalorder %v937, 15
        %vm1236 = vcmp.lt.s32.totalorder %v938, 15
        %vm1237 = vcmp.lt.s32.totalorder %v939, 15
        %vm1238 = vcmp.lt.s32.totalorder %v940, 15
        %vm1239 = vcmp.lt.s32.totalorder %v941, 15
        %vm1240 = vcmp.lt.s32.totalorder %v942, 15
        %vm1241 = vcmp.lt.s32.totalorder %v943, 15
        %vm1242 = vcmp.lt.s32.totalorder %v944, 15
        %vm1243 = vcmp.lt.s32.totalorder %v945, 15
        %vm1244 = vcmp.lt.s32.totalorder %v946, 15
        %vm1245 = vcmp.lt.s32.totalorder %v947, 15
        %vm1246 = vcmp.lt.s32.totalorder %v948, 15
        %v1247 = vsel %vm1215, %v1183, 0.0
        %v1248 = vsel %vm1216, %v1184, 0.0
        %v1249 = vsel %vm1217, %v1185, 0.0
        %v1250 = vsel %vm1218, %v1186, 0.0
        %v1251 = vsel %vm1219, %v1187, 0.0
        %v1252 = vsel %vm1220, %v1188, 0.0
        %v1253 = vsel %vm1221, %v1189, 0.0
        %v1254 = vsel %vm1222, %v1190, 0.0
        %v1255 = vsel %vm1223, %v1191, 0.0
        %v1256 = vsel %vm1224, %v1192, 0.0
        %v1257 = vsel %vm1225, %v1193, 0.0
        %v1258 = vsel %vm1226, %v1194, 0.0
        %v1259 = vsel %vm1227, %v1195, 0.0
        %v1260 = vsel %vm1228, %v1196, 0.0
        %v1261 = vsel %vm1229, %v1197, 0.0
        %v1262 = vsel %vm1230, %v1198, 0.0
        %v1263 = vsel %vm1231, %v1199, 0.0
        %v1264 = vsel %vm1232, %v1200, 0.0
        %v1265 = vsel %vm1233, %v1201, 0.0
        %v1266 = vsel %vm1234, %v1202, 0.0
        %v1267 = vsel %vm1235, %v1203, 0.0
        %v1268 = vsel %vm1236, %v1204, 0.0
        %v1269 = vsel %vm1237, %v1205, 0.0
        %v1270 = vsel %vm1238, %v1206, 0.0
        %v1271 = vsel %vm1239, %v1207, 0.0
        %v1272 = vsel %vm1240, %v1208, 0.0
        %v1273 = vsel %vm1241, %v1209, 0.0
        %v1274 = vsel %vm1242, %v1210, 0.0
        %v1275 = vsel %vm1243, %v1211, 0.0
        %v1276 = vsel %vm1244, %v1212, 0.0
        %v1277 = vsel %vm1245, %v1213, 0.0
        %v1278 = vsel %vm1246, %v1214, 0.0
        %v1279 = vlaneseq
        %v1280 = vshrl.u32 %v1279, 7
        %v1281 = vsub.s32 2, %v1280
        %v1282 = vrot.slane %v949, %v1281
        %v1283 = vmul.f32 %v1247, %v1282
        %v1284 = vmul.f32 %v1248, %v1282
        %v1285 = vmul.f32 %v1249, %v1282
        %v1286 = vmul.f32 %v1250, %v1282
        %v1287 = vmul.f32 %v1251, %v1282
        %v1288 = vmul.f32 %v1252, %v1282
        %v1289 = vmul.f32 %v1253, %v1282
        %v1290 = vmul.f32 %v1254, %v1282
        %v1291 = vmul.f32 %v1255, %v1282
        %v1292 = vmul.f32 %v1256, %v1282
        %v1293 = vmul.f32 %v1257, %v1282
        %v1294 = vmul.f32 %v1258, %v1282
        %v1295 = vmul.f32 %v1259, %v1282
        %v1296 = vmul.f32 %v1260, %v1282
        %v1297 = vmul.f32 %v1261, %v1282
        %v1298 = vmul.f32 %v1262, %v1282
        %v1299 = vmul.f32 %v1263, %v1282
        %v1300 = vmul.f32 %v1264, %v1282
        %v1301 = vmul.f32 %v1265, %v1282
        %v1302 = vmul.f32 %v1266, %v1282
        %v1303 = vmul.f32 %v1267, %v1282
        %v1304 = vmul.f32 %v1268, %v1282
        %v1305 = vmul.f32 %v1269, %v1282
        %v1306 = vmul.f32 %v1270, %v1282
        %v1307 = vmul.f32 %v1271, %v1282
        %v1308 = vmul.f32 %v1272, %v1282
        %v1309 = vmul.f32 %v1273, %v1282
        %v1310 = vmul.f32 %v1274, %v1282
        %v1311 = vmul.f32 %v1275, %v1282
        %v1312 = vmul.f32 %v1276, %v1282
        %v1313 = vmul.f32 %v1277, %v1282
        %v1314 = vmul.f32 %v1278, %v1282
        %v1315 = vadd.f32 %v1151, %v1283
        %v1316 = vadd.f32 %v1152, %v1284
        %v1317 = vadd.f32 %v1153, %v1285
        %v1318 = vadd.f32 %v1154, %v1286
        %v1319 = vadd.f32 %v1155, %v1287
        %v1320 = vadd.f32 %v1156, %v1288
        %v1321 = vadd.f32 %v1157, %v1289
        %v1322 = vadd.f32 %v1158, %v1290
        %v1323 = vadd.f32 %v1159, %v1291
        %v1324 = vadd.f32 %v1160, %v1292
        %v1325 = vadd.f32 %v1161, %v1293
        %v1326 = vadd.f32 %v1162, %v1294
        %v1327 = vadd.f32 %v1163, %v1295
        %v1328 = vadd.f32 %v1164, %v1296
        %v1329 = vadd.f32 %v1165, %v1297
        %v1330 = vadd.f32 %v1166, %v1298
        %v1331 = vadd.f32 %v1167, %v1299
        %v1332 = vadd.f32 %v1168, %v1300
        %v1333 = vadd.f32 %v1169, %v1301
        %v1334 = vadd.f32 %v1170, %v1302
        %v1335 = vadd.f32 %v1171, %v1303
        %v1336 = vadd.f32 %v1172, %v1304
        %v1337 = vadd.f32 %v1173, %v1305
        %v1338 = vadd.f32 %v1174, %v1306
        %v1339 = vadd.f32 %v1175, %v1307
        %v1340 = vadd.f32 %v1176, %v1308
        %v1341 = vadd.f32 %v1177, %v1309
        %v1342 = vadd.f32 %v1178, %v1310
        %v1343 = vadd.f32 %v1179, %v1311
        %v1344 = vadd.f32 %v1180, %v1312
        %v1345 = vadd.f32 %v1181, %v1313
        %v1346 = vadd.f32 %v1182, %v1314
        %v1347 = vld [vmem:[#allocation2 + $0x107] sm:$0xff]
        %v1348 = vld [vmem:[#allocation2 + $0x10f] sm:$0xff]
        %v1349 = vsel %vm983, %v953, 0.0
        %v1350 = vsel %vm984, %v954, 0.0
        %v1351 = vsel %vm985, %v955, 0.0
        %v1352 = vsel %vm986, %v956, 0.0
        %v1353 = vsel %vm987, %v957, 0.0
        %v1354 = vsel %vm988, %v958, 0.0
        %v1355 = vsel %vm989, %v959, 0.0
        %v1356 = vsel %vm990, %v960, 0.0
        %v1357 = vsel %vm991, %v961, 0.0
        %v1358 = vsel %vm992, %v962, 0.0
        %v1359 = vsel %vm993, %v963, 0.0
        %v1360 = vsel %vm994, %v964, 0.0
        %v1361 = vsel %vm995, %v965, 0.0
        %v1362 = vsel %vm996, %v966, 0.0
        %v1363 = vsel %vm997, %v967, 0.0
        %v1364 = vsel %vm998, %v968, 0.0
        %v1365 = vsel %vm999, %v969, 0.0
        %v1366 = vsel %vm1000, %v970, 0.0
        %v1367 = vsel %vm1001, %v971, 0.0
        %v1368 = vsel %vm1002, %v972, 0.0
        %v1369 = vsel %vm1003, %v973, 0.0
        %v1370 = vsel %vm1004, %v974, 0.0
        %v1371 = vsel %vm1005, %v975, 0.0
        %v1372 = vsel %vm1006, %v976, 0.0
        %v1373 = vsel %vm1007, %v977, 0.0
        %v1374 = vsel %vm1008, %v978, 0.0
        %v1375 = vsel %vm1009, %v979, 0.0
        %v1376 = vsel %vm1010, %v980, 0.0
        %v1377 = vsel %vm1011, %v981, 0.0
        %v1378 = vsel %vm1012, %v982, 0.0
        %v1379 = vsel %vm1013, %v1347, 0.0
        %v1380 = vsel %vm1014, %v1348, 0.0
        %v1381 = vlaneseq
        %v1382 = vshrl.u32 %v1381, 7
        %v1383 = vsub.s32 3, %v1382
        %v1384 = vrot.slane %v949, %v1383
        %v1385 = vmul.f32 %v1349, %v1384
        %v1386 = vmul.f32 %v1350, %v1384
        %v1387 = vmul.f32 %v1351, %v1384
        %v1388 = vmul.f32 %v1352, %v1384
        %v1389 = vmul.f32 %v1353, %v1384
        %v1390 = vmul.f32 %v1354, %v1384
        %v1391 = vmul.f32 %v1355, %v1384
        %v1392 = vmul.f32 %v1356, %v1384
        %v1393 = vmul.f32 %v1357, %v1384
        %v1394 = vmul.f32 %v1358, %v1384
        %v1395 = vmul.f32 %v1359, %v1384
        %v1396 = vmul.f32 %v1360, %v1384
        %v1397 = vmul.f32 %v1361, %v1384
        %v1398 = vmul.f32 %v1362, %v1384
        %v1399 = vmul.f32 %v1363, %v1384
        %v1400 = vmul.f32 %v1364, %v1384
        %v1401 = vmul.f32 %v1365, %v1384
        %v1402 = vmul.f32 %v1366, %v1384
        %v1403 = vmul.f32 %v1367, %v1384
        %v1404 = vmul.f32 %v1368, %v1384
        %v1405 = vmul.f32 %v1369, %v1384
        %v1406 = vmul.f32 %v1370, %v1384
        %v1407 = vmul.f32 %v1371, %v1384
        %v1408 = vmul.f32 %v1372, %v1384
        %v1409 = vmul.f32 %v1373, %v1384
        %v1410 = vmul.f32 %v1374, %v1384
        %v1411 = vmul.f32 %v1375, %v1384
        %v1412 = vmul.f32 %v1376, %v1384
        %v1413 = vmul.f32 %v1377, %v1384
        %v1414 = vmul.f32 %v1378, %v1384
        %v1415 = vmul.f32 %v1379, %v1384
        %v1416 = vmul.f32 %v1380, %v1384
        %v1417 = vadd.f32 %v1315, %v1385
        %v1418 = vadd.f32 %v1316, %v1386
        %v1419 = vadd.f32 %v1317, %v1387
        %v1420 = vadd.f32 %v1318, %v1388
        %v1421 = vadd.f32 %v1319, %v1389
        %v1422 = vadd.f32 %v1320, %v1390
        %v1423 = vadd.f32 %v1321, %v1391
        %v1424 = vadd.f32 %v1322, %v1392
        %v1425 = vadd.f32 %v1323, %v1393
        %v1426 = vadd.f32 %v1324, %v1394
        %v1427 = vadd.f32 %v1325, %v1395
        %v1428 = vadd.f32 %v1326, %v1396
        %v1429 = vadd.f32 %v1327, %v1397
        %v1430 = vadd.f32 %v1328, %v1398
        %v1431 = vadd.f32 %v1329, %v1399
        %v1432 = vadd.f32 %v1330, %v1400
        %v1433 = vadd.f32 %v1331, %v1401
        %v1434 = vadd.f32 %v1332, %v1402
        %v1435 = vadd.f32 %v1333, %v1403
        %v1436 = vadd.f32 %v1334, %v1404
        %v1437 = vadd.f32 %v1335, %v1405
        %v1438 = vadd.f32 %v1336, %v1406
        %v1439 = vadd.f32 %v1337, %v1407
        %v1440 = vadd.f32 %v1338, %v1408
        %v1441 = vadd.f32 %v1339, %v1409
        %v1442 = vadd.f32 %v1340, %v1410
        %v1443 = vadd.f32 %v1341, %v1411
        %v1444 = vadd.f32 %v1342, %v1412
        %v1445 = vadd.f32 %v1343, %v1413
        %v1446 = vadd.f32 %v1344, %v1414
        %v1447 = vadd.f32 %v1345, %v1415
        %v1448 = vadd.f32 %v1346, %v1416
        %v1449 = vld [vmem:[#allocation2 + $0x108] sm:$0xff]
        %v1450 = vld [vmem:[#allocation2 + $0x110] sm:$0xff]
        %v1451 = vlaneseq
        %v1452 = vshrl.u32 %v1451, 7
        %v1453 = vsub.s32 4, %v1452
        %v1454 = vrot.slane %v949, %v1453
        %v1455 = vmul.f32 %v1085, %v1454
        %v1456 = vmul.f32 %v1086, %v1454
        %v1457 = vmul.f32 %v1087, %v1454
        %v1458 = vmul.f32 %v1088, %v1454
        %v1459 = vmul.f32 %v1089, %v1454
        %v1460 = vmul.f32 %v1090, %v1454
        %v1461 = vmul.f32 %v1091, %v1454
        %v1462 = vmul.f32 %v1092, %v1454
        %v1463 = vmul.f32 %v1093, %v1454
        %v1464 = vmul.f32 %v1094, %v1454
        %v1465 = vmul.f32 %v1095, %v1454
        %v1466 = vmul.f32 %v1096, %v1454
        %v1467 = vmul.f32 %v1097, %v1454
        %v1468 = vmul.f32 %v1098, %v1454
        %v1469 = vmul.f32 %v1099, %v1454
        %v1470 = vmul.f32 %v1100, %v1454
        %v1471 = vmul.f32 %v1101, %v1454
        %v1472 = vmul.f32 %v1102, %v1454
        %v1473 = vmul.f32 %v1103, %v1454
        %v1474 = vmul.f32 %v1104, %v1454
        %v1475 = vmul.f32 %v1105, %v1454
        %v1476 = vmul.f32 %v1106, %v1454
        %v1477 = vmul.f32 %v1107, %v1454
        %v1478 = vmul.f32 %v1108, %v1454
        %v1479 = vmul.f32 %v1109, %v1454
        %v1480 = vmul.f32 %v1110, %v1454
        %v1481 = vmul.f32 %v1111, %v1454
        %v1482 = vmul.f32 %v1112, %v1454
        %v1483 = vmul.f32 %v1113, %v1454
        %v1484 = vmul.f32 %v1114, %v1454
        %v1485 = vmul.f32 %v1449, %v1454
        %v1486 = vmul.f32 %v1450, %v1454
        %v1487 = vadd.f32 %v1417, %v1455
        %v1488 = vadd.f32 %v1418, %v1456
        %v1489 = vadd.f32 %v1419, %v1457
        %v1490 = vadd.f32 %v1420, %v1458
        %v1491 = vadd.f32 %v1421, %v1459
        %v1492 = vadd.f32 %v1422, %v1460
        %v1493 = vadd.f32 %v1423, %v1461
        %v1494 = vadd.f32 %v1424, %v1462
        %v1495 = vadd.f32 %v1425, %v1463
        %v1496 = vadd.f32 %v1426, %v1464
        %v1497 = vadd.f32 %v1427, %v1465
        %v1498 = vadd.f32 %v1428, %v1466
        %v1499 = vadd.f32 %v1429, %v1467
        %v1500 = vadd.f32 %v1430, %v1468
        %v1501 = vadd.f32 %v1431, %v1469
        %v1502 = vadd.f32 %v1432, %v1470
        %v1503 = vadd.f32 %v1433, %v1471
        %v1504 = vadd.f32 %v1434, %v1472
        %v1505 = vadd.f32 %v1435, %v1473
        %v1506 = vadd.f32 %v1436, %v1474
        %v1507 = vadd.f32 %v1437, %v1475
        %v1508 = vadd.f32 %v1438, %v1476
        %v1509 = vadd.f32 %v1439, %v1477
        %v1510 = vadd.f32 %v1440, %v1478
        %v1511 = vadd.f32 %v1441, %v1479
        %v1512 = vadd.f32 %v1442, %v1480
        %v1513 = vadd.f32 %v1443, %v1481
        %v1514 = vadd.f32 %v1444, %v1482
        %v1515 = vadd.f32 %v1445, %v1483
        %v1516 = vadd.f32 %v1446, %v1484
        %v1517 = vadd.f32 %v1447, %v1485
        %v1518 = vadd.f32 %v1448, %v1486
        %v1519 = vld [vmem:[#allocation2 + $0x109] sm:$0xff]
        %v1520 = vld [vmem:[#allocation2 + $0x111] sm:$0xff]
        %v1521 = vsel %vm1215, %v1185, 0.0
        %v1522 = vsel %vm1216, %v1186, 0.0
        %v1523 = vsel %vm1217, %v1187, 0.0
        %v1524 = vsel %vm1218, %v1188, 0.0
        %v1525 = vsel %vm1219, %v1189, 0.0
        %v1526 = vsel %vm1220, %v1190, 0.0
        %v1527 = vsel %vm1221, %v1191, 0.0
        %v1528 = vsel %vm1222, %v1192, 0.0
        %v1529 = vsel %vm1223, %v1193, 0.0
        %v1530 = vsel %vm1224, %v1194, 0.0
        %v1531 = vsel %vm1225, %v1195, 0.0
        %v1532 = vsel %vm1226, %v1196, 0.0
        %v1533 = vsel %vm1227, %v1197, 0.0
        %v1534 = vsel %vm1228, %v1198, 0.0
        %v1535 = vsel %vm1229, %v1199, 0.0
        %v1536 = vsel %vm1230, %v1200, 0.0
        %v1537 = vsel %vm1231, %v1201, 0.0
        %v1538 = vsel %vm1232, %v1202, 0.0
        %v1539 = vsel %vm1233, %v1203, 0.0
        %v1540 = vsel %vm1234, %v1204, 0.0
        %v1541 = vsel %vm1235, %v1205, 0.0
        %v1542 = vsel %vm1236, %v1206, 0.0
        %v1543 = vsel %vm1237, %v1207, 0.0
        %v1544 = vsel %vm1238, %v1208, 0.0
        %v1545 = vsel %vm1239, %v1209, 0.0
        %v1546 = vsel %vm1240, %v1210, 0.0
        %v1547 = vsel %vm1241, %v1211, 0.0
        %v1548 = vsel %vm1242, %v1212, 0.0
        %v1549 = vsel %vm1243, %v1213, 0.0
        %v1550 = vsel %vm1244, %v1214, 0.0
        %v1551 = vsel %vm1245, %v1519, 0.0
        %v1552 = vsel %vm1246, %v1520, 0.0
        %v1553 = vlaneseq
        %v1554 = vshrl.u32 %v1553, 7
        %v1555 = vsub.s32 5, %v1554
        %v1556 = vrot.slane %v949, %v1555
        %v1557 = vmul.f32 %v1521, %v1556
        %v1558 = vmul.f32 %v1522, %v1556
        %v1559 = vmul.f32 %v1523, %v1556
        %v1560 = vmul.f32 %v1524, %v1556
        %v1561 = vmul.f32 %v1525, %v1556
        %v1562 = vmul.f32 %v1526, %v1556
        %v1563 = vmul.f32 %v1527, %v1556
        %v1564 = vmul.f32 %v1528, %v1556
        %v1565 = vmul.f32 %v1529, %v1556
        %v1566 = vmul.f32 %v1530, %v1556
        %v1567 = vmul.f32 %v1531, %v1556
        %v1568 = vmul.f32 %v1532, %v1556
        %v1569 = vmul.f32 %v1533, %v1556
        %v1570 = vmul.f32 %v1534, %v1556
        %v1571 = vmul.f32 %v1535, %v1556
        %v1572 = vmul.f32 %v1536, %v1556
        %v1573 = vmul.f32 %v1537, %v1556
        %v1574 = vmul.f32 %v1538, %v1556
        %v1575 = vmul.f32 %v1539, %v1556
        %v1576 = vmul.f32 %v1540, %v1556
        %v1577 = vmul.f32 %v1541, %v1556
        %v1578 = vmul.f32 %v1542, %v1556
        %v1579 = vmul.f32 %v1543, %v1556
        %v1580 = vmul.f32 %v1544, %v1556
        %v1581 = vmul.f32 %v1545, %v1556
        %v1582 = vmul.f32 %v1546, %v1556
        %v1583 = vmul.f32 %v1547, %v1556
        %v1584 = vmul.f32 %v1548, %v1556
        %v1585 = vmul.f32 %v1549, %v1556
        %v1586 = vmul.f32 %v1550, %v1556
        %v1587 = vmul.f32 %v1551, %v1556
        %v1588 = vmul.f32 %v1552, %v1556
        %v1589 = vadd.f32 %v1487, %v1557
        %v1590 = vadd.f32 %v1488, %v1558
        %v1591 = vadd.f32 %v1489, %v1559
        %v1592 = vadd.f32 %v1490, %v1560
        %v1593 = vadd.f32 %v1491, %v1561
        %v1594 = vadd.f32 %v1492, %v1562
        %v1595 = vadd.f32 %v1493, %v1563
        %v1596 = vadd.f32 %v1494, %v1564
        %v1597 = vadd.f32 %v1495, %v1565
        %v1598 = vadd.f32 %v1496, %v1566
        %v1599 = vadd.f32 %v1497, %v1567
        %v1600 = vadd.f32 %v1498, %v1568
        %v1601 = vadd.f32 %v1499, %v1569
        %v1602 = vadd.f32 %v1500, %v1570
        %v1603 = vadd.f32 %v1501, %v1571
        %v1604 = vadd.f32 %v1502, %v1572
        %v1605 = vadd.f32 %v1503, %v1573
        %v1606 = vadd.f32 %v1504, %v1574
        %v1607 = vadd.f32 %v1505, %v1575
        %v1608 = vadd.f32 %v1506, %v1576
        %v1609 = vadd.f32 %v1507, %v1577
        %v1610 = vadd.f32 %v1508, %v1578
        %v1611 = vadd.f32 %v1509, %v1579
        %v1612 = vadd.f32 %v1510, %v1580
        %v1613 = vadd.f32 %v1511, %v1581
        %v1614 = vadd.f32 %v1512, %v1582
        %v1615 = vadd.f32 %v1513, %v1583
        %v1616 = vadd.f32 %v1514, %v1584
        %v1617 = vadd.f32 %v1515, %v1585
        %v1618 = vadd.f32 %v1516, %v1586
        %v1619 = vadd.f32 %v1517, %v1587
        %v1620 = vadd.f32 %v1518, %v1588
        %v1621 = vld [vmem:[#allocation2 + $0x117] sm:$0xff]
        %v1622 = vld [vmem:[#allocation2 + $0x11f] sm:$0xff]
        %v1623 = vsel %vm983, %v955, 0.0
        %v1624 = vsel %vm984, %v956, 0.0
        %v1625 = vsel %vm985, %v957, 0.0
        %v1626 = vsel %vm986, %v958, 0.0
        %v1627 = vsel %vm987, %v959, 0.0
        %v1628 = vsel %vm988, %v960, 0.0
        %v1629 = vsel %vm989, %v961, 0.0
        %v1630 = vsel %vm990, %v962, 0.0
        %v1631 = vsel %vm991, %v963, 0.0
        %v1632 = vsel %vm992, %v964, 0.0
        %v1633 = vsel %vm993, %v965, 0.0
        %v1634 = vsel %vm994, %v966, 0.0
        %v1635 = vsel %vm995, %v967, 0.0
        %v1636 = vsel %vm996, %v968, 0.0
        %v1637 = vsel %vm997, %v969, 0.0
        %v1638 = vsel %vm998, %v970, 0.0
        %v1639 = vsel %vm999, %v971, 0.0
        %v1640 = vsel %vm1000, %v972, 0.0
        %v1641 = vsel %vm1001, %v973, 0.0
        %v1642 = vsel %vm1002, %v974, 0.0
        %v1643 = vsel %vm1003, %v975, 0.0
        %v1644 = vsel %vm1004, %v976, 0.0
        %v1645 = vsel %vm1005, %v977, 0.0
        %v1646 = vsel %vm1006, %v978, 0.0
        %v1647 = vsel %vm1007, %v979, 0.0
        %v1648 = vsel %vm1008, %v980, 0.0
        %v1649 = vsel %vm1009, %v981, 0.0
        %v1650 = vsel %vm1010, %v982, 0.0
        %v1651 = vsel %vm1011, %v1347, 0.0
        %v1652 = vsel %vm1012, %v1348, 0.0
        %v1653 = vsel %vm1013, %v1621, 0.0
        %v1654 = vsel %vm1014, %v1622, 0.0
        %v1655 = vlaneseq
        %v1656 = vshrl.u32 %v1655, 7
        %v1657 = vsub.s32 6, %v1656
        %v1658 = vrot.slane %v949, %v1657
        %v1659 = vmul.f32 %v1623, %v1658
        %v1660 = vmul.f32 %v1624, %v1658
        %v1661 = vmul.f32 %v1625, %v1658
        %v1662 = vmul.f32 %v1626, %v1658
        %v1663 = vmul.f32 %v1627, %v1658
        %v1664 = vmul.f32 %v1628, %v1658
        %v1665 = vmul.f32 %v1629, %v1658
        %v1666 = vmul.f32 %v1630, %v1658
        %v1667 = vmul.f32 %v1631, %v1658
        %v1668 = vmul.f32 %v1632, %v1658
        %v1669 = vmul.f32 %v1633, %v1658
        %v1670 = vmul.f32 %v1634, %v1658
        %v1671 = vmul.f32 %v1635, %v1658
        %v1672 = vmul.f32 %v1636, %v1658
        %v1673 = vmul.f32 %v1637, %v1658
        %v1674 = vmul.f32 %v1638, %v1658
        %v1675 = vmul.f32 %v1639, %v1658
        %v1676 = vmul.f32 %v1640, %v1658
        %v1677 = vmul.f32 %v1641, %v1658
        %v1678 = vmul.f32 %v1642, %v1658
        %v1679 = vmul.f32 %v1643, %v1658
        %v1680 = vmul.f32 %v1644, %v1658
        %v1681 = vmul.f32 %v1645, %v1658
        %v1682 = vmul.f32 %v1646, %v1658
        %v1683 = vmul.f32 %v1647, %v1658
        %v1684 = vmul.f32 %v1648, %v1658
        %v1685 = vmul.f32 %v1649, %v1658
        %v1686 = vmul.f32 %v1650, %v1658
        %v1687 = vmul.f32 %v1651, %v1658
        %v1688 = vmul.f32 %v1652, %v1658
        %v1689 = vmul.f32 %v1653, %v1658
        %v1690 = vmul.f32 %v1654, %v1658
        %v1691 = vadd.f32 %v1589, %v1659
        %v1692 = vadd.f32 %v1590, %v1660
        %v1693 = vadd.f32 %v1591, %v1661
        %v1694 = vadd.f32 %v1592, %v1662
        %v1695 = vadd.f32 %v1593, %v1663
        %v1696 = vadd.f32 %v1594, %v1664
        %v1697 = vadd.f32 %v1595, %v1665
        %v1698 = vadd.f32 %v1596, %v1666
        %v1699 = vadd.f32 %v1597, %v1667
        %v1700 = vadd.f32 %v1598, %v1668
        %v1701 = vadd.f32 %v1599, %v1669
        %v1702 = vadd.f32 %v1600, %v1670
        %v1703 = vadd.f32 %v1601, %v1671
        %v1704 = vadd.f32 %v1602, %v1672
        %v1705 = vadd.f32 %v1603, %v1673
        %v1706 = vadd.f32 %v1604, %v1674
        %v1707 = vadd.f32 %v1605, %v1675
        %v1708 = vadd.f32 %v1606, %v1676
        %v1709 = vadd.f32 %v1607, %v1677
        %v1710 = vadd.f32 %v1608, %v1678
        %v1711 = vadd.f32 %v1609, %v1679
        %v1712 = vadd.f32 %v1610, %v1680
        %v1713 = vadd.f32 %v1611, %v1681
        %v1714 = vadd.f32 %v1612, %v1682
        %v1715 = vadd.f32 %v1613, %v1683
        %v1716 = vadd.f32 %v1614, %v1684
        %v1717 = vadd.f32 %v1615, %v1685
        %v1718 = vadd.f32 %v1616, %v1686
        %v1719 = vadd.f32 %v1617, %v1687
        %v1720 = vadd.f32 %v1618, %v1688
        %v1721 = vadd.f32 %v1619, %v1689
        %v1722 = vadd.f32 %v1620, %v1690
        %v1723 = vld [vmem:[#allocation2 + $0x118] sm:$0xff]
        %v1724 = vld [vmem:[#allocation2 + $0x120] sm:$0xff]
        %v1725 = vlaneseq
        %v1726 = vshrl.u32 %v1725, 7
        %v1727 = vsub.s32 7, %v1726
        %v1728 = vrot.slane %v949, %v1727
        %v1729 = vmul.f32 %v1087, %v1728
        %v1730 = vmul.f32 %v1088, %v1728
        %v1731 = vmul.f32 %v1089, %v1728
        %v1732 = vmul.f32 %v1090, %v1728
        %v1733 = vmul.f32 %v1091, %v1728
        %v1734 = vmul.f32 %v1092, %v1728
        %v1735 = vmul.f32 %v1093, %v1728
        %v1736 = vmul.f32 %v1094, %v1728
        %v1737 = vmul.f32 %v1095, %v1728
        %v1738 = vmul.f32 %v1096, %v1728
        %v1739 = vmul.f32 %v1097, %v1728
        %v1740 = vmul.f32 %v1098, %v1728
        %v1741 = vmul.f32 %v1099, %v1728
        %v1742 = vmul.f32 %v1100, %v1728
        %v1743 = vmul.f32 %v1101, %v1728
        %v1744 = vmul.f32 %v1102, %v1728
        %v1745 = vmul.f32 %v1103, %v1728
        %v1746 = vmul.f32 %v1104, %v1728
        %v1747 = vmul.f32 %v1105, %v1728
        %v1748 = vmul.f32 %v1106, %v1728
        %v1749 = vmul.f32 %v1107, %v1728
        %v1750 = vmul.f32 %v1108, %v1728
        %v1751 = vmul.f32 %v1109, %v1728
        %v1752 = vmul.f32 %v1110, %v1728
        %v1753 = vmul.f32 %v1111, %v1728
        %v1754 = vmul.f32 %v1112, %v1728
        %v1755 = vmul.f32 %v1113, %v1728
        %v1756 = vmul.f32 %v1114, %v1728
        %v1757 = vmul.f32 %v1449, %v1728
        %v1758 = vmul.f32 %v1450, %v1728
        %v1759 = vmul.f32 %v1723, %v1728
        %v1760 = vmul.f32 %v1724, %v1728
        %v1761 = vadd.f32 %v1691, %v1729
        %v1762 = vadd.f32 %v1692, %v1730
        %v1763 = vadd.f32 %v1693, %v1731
        %v1764 = vadd.f32 %v1694, %v1732
        %v1765 = vadd.f32 %v1695, %v1733
        %v1766 = vadd.f32 %v1696, %v1734
        %v1767 = vadd.f32 %v1697, %v1735
        %v1768 = vadd.f32 %v1698, %v1736
        %v1769 = vadd.f32 %v1699, %v1737
        %v1770 = vadd.f32 %v1700, %v1738
        %v1771 = vadd.f32 %v1701, %v1739
        %v1772 = vadd.f32 %v1702, %v1740
        %v1773 = vadd.f32 %v1703, %v1741
        %v1774 = vadd.f32 %v1704, %v1742
        %v1775 = vadd.f32 %v1705, %v1743
        %v1776 = vadd.f32 %v1706, %v1744
        %v1777 = vadd.f32 %v1707, %v1745
        %v1778 = vadd.f32 %v1708, %v1746
        %v1779 = vadd.f32 %v1709, %v1747
        %v1780 = vadd.f32 %v1710, %v1748
        %v1781 = vadd.f32 %v1711, %v1749
        %v1782 = vadd.f32 %v1712, %v1750
        %v1783 = vadd.f32 %v1713, %v1751
        %v1784 = vadd.f32 %v1714, %v1752
        %v1785 = vadd.f32 %v1715, %v1753
        %v1786 = vadd.f32 %v1716, %v1754
        %v1787 = vadd.f32 %v1717, %v1755
        %v1788 = vadd.f32 %v1718, %v1756
        %v1789 = vadd.f32 %v1719, %v1757
        %v1790 = vadd.f32 %v1720, %v1758
        %v1791 = vadd.f32 %v1721, %v1759
        %v1792 = vadd.f32 %v1722, %v1760
        %v1793 = vld [vmem:[#allocation2 + $0x119] sm:$0xff]
        %v1794 = vld [vmem:[#allocation2 + $0x121] sm:$0xff]
        %v1795 = vsel %vm1215, %v1187, 0.0
        %v1796 = vsel %vm1216, %v1188, 0.0
        %v1797 = vsel %vm1217, %v1189, 0.0
        %v1798 = vsel %vm1218, %v1190, 0.0
        %v1799 = vsel %vm1219, %v1191, 0.0
        %v1800 = vsel %vm1220, %v1192, 0.0
        %v1801 = vsel %vm1221, %v1193, 0.0
        %v1802 = vsel %vm1222, %v1194, 0.0
        %v1803 = vsel %vm1223, %v1195, 0.0
        %v1804 = vsel %vm1224, %v1196, 0.0
        %v1805 = vsel %vm1225, %v1197, 0.0
        %v1806 = vsel %vm1226, %v1198, 0.0
        %v1807 = vsel %vm1227, %v1199, 0.0
        %v1808 = vsel %vm1228, %v1200, 0.0
        %v1809 = vsel %vm1229, %v1201, 0.0
        %v1810 = vsel %vm1230, %v1202, 0.0
        %v1811 = vsel %vm1231, %v1203, 0.0
        %v1812 = vsel %vm1232, %v1204, 0.0
        %v1813 = vsel %vm1233, %v1205, 0.0
        %v1814 = vsel %vm1234, %v1206, 0.0
        %v1815 = vsel %vm1235, %v1207, 0.0
        %v1816 = vsel %vm1236, %v1208, 0.0
        %v1817 = vsel %vm1237, %v1209, 0.0
        %v1818 = vsel %vm1238, %v1210, 0.0
        %v1819 = vsel %vm1239, %v1211, 0.0
        %v1820 = vsel %vm1240, %v1212, 0.0
        %v1821 = vsel %vm1241, %v1213, 0.0
        %v1822 = vsel %vm1242, %v1214, 0.0
        %v1823 = vsel %vm1243, %v1519, 0.0
        %v1824 = vsel %vm1244, %v1520, 0.0
        %v1825 = vsel %vm1245, %v1793, 0.0
        %v1826 = vsel %vm1246, %v1794, 0.0
        %v1827 = vlaneseq
        %v1828 = vshrl.u32 %v1827, 7
        %v1829 = vsub.s32 0, %v1828
        %v1830 = vrot.slane %v950, %v1829
        %v1831 = vmul.f32 %v1795, %v1830
        %v1832 = vmul.f32 %v1796, %v1830
        %v1833 = vmul.f32 %v1797, %v1830
        %v1834 = vmul.f32 %v1798, %v1830
        %v1835 = vmul.f32 %v1799, %v1830
        %v1836 = vmul.f32 %v1800, %v1830
        %v1837 = vmul.f32 %v1801, %v1830
        %v1838 = vmul.f32 %v1802, %v1830
        %v1839 = vmul.f32 %v1803, %v1830
        %v1840 = vmul.f32 %v1804, %v1830
        %v1841 = vmul.f32 %v1805, %v1830
        %v1842 = vmul.f32 %v1806, %v1830
        %v1843 = vmul.f32 %v1807, %v1830
        %v1844 = vmul.f32 %v1808, %v1830
        %v1845 = vmul.f32 %v1809, %v1830
        %v1846 = vmul.f32 %v1810, %v1830
        %v1847 = vmul.f32 %v1811, %v1830
        %v1848 = vmul.f32 %v1812, %v1830
        %v1849 = vmul.f32 %v1813, %v1830
        %v1850 = vmul.f32 %v1814, %v1830
        %v1851 = vmul.f32 %v1815, %v1830
        %v1852 = vmul.f32 %v1816, %v1830
        %v1853 = vmul.f32 %v1817, %v1830
        %v1854 = vmul.f32 %v1818, %v1830
        %v1855 = vmul.f32 %v1819, %v1830
        %v1856 = vmul.f32 %v1820, %v1830
        %v1857 = vmul.f32 %v1821, %v1830
        %v1858 = vmul.f32 %v1822, %v1830
        %v1859 = vmul.f32 %v1823, %v1830
        %v1860 = vmul.f32 %v1824, %v1830
        %v1861 = vmul.f32 %v1825, %v1830
        %v1862 = vmul.f32 %v1826, %v1830
        %v1863 = vadd.f32 %v1761, %v1831
        %v1864 = vadd.f32 %v1762, %v1832
        %v1865 = vadd.f32 %v1763, %v1833
        %v1866 = vadd.f32 %v1764, %v1834
        %v1867 = vadd.f32 %v1765, %v1835
        %v1868 = vadd.f32 %v1766, %v1836
        %v1869 = vadd.f32 %v1767, %v1837
        %v1870 = vadd.f32 %v1768, %v1838
        %v1871 = vadd.f32 %v1769, %v1839
        %v1872 = vadd.f32 %v1770, %v1840
        %v1873 = vadd.f32 %v1771, %v1841
        %v1874 = vadd.f32 %v1772, %v1842
        %v1875 = vadd.f32 %v1773, %v1843
        %v1876 = vadd.f32 %v1774, %v1844
        %v1877 = vadd.f32 %v1775, %v1845
        %v1878 = vadd.f32 %v1776, %v1846
        %v1879 = vadd.f32 %v1777, %v1847
        %v1880 = vadd.f32 %v1778, %v1848
        %v1881 = vadd.f32 %v1779, %v1849
        %v1882 = vadd.f32 %v1780, %v1850
        %v1883 = vadd.f32 %v1781, %v1851
        %v1884 = vadd.f32 %v1782, %v1852
        %v1885 = vadd.f32 %v1783, %v1853
        %v1886 = vadd.f32 %v1784, %v1854
        %v1887 = vadd.f32 %v1785, %v1855
        %v1888 = vadd.f32 %v1786, %v1856
        %v1889 = vadd.f32 %v1787, %v1857
        %v1890 = vadd.f32 %v1788, %v1858
        %v1891 = vadd.f32 %v1789, %v1859
        %v1892 = vadd.f32 %v1790, %v1860
        %v1893 = vadd.f32 %v1791, %v1861
        %v1894 = vadd.f32 %v1792, %v1862
        %v1895 = vld [vmem:[%s6] sm:$0x1]
        %v1897 = vlaneseq
        %v1898 = vshrl.u32 %v1897, 7
        %v1899 = vsub.s32 0, %v1898
        %v1900 = vrot.slane %v1895, %v1899
        %v1902 = vmul.f32 %v1863, %v1900
        %v1903 = vmul.f32 %v1864, %v1900
        %v1904 = vmul.f32 %v1865, %v1900
        %v1905 = vmul.f32 %v1866, %v1900
        %v1906 = vmul.f32 %v1867, %v1900
        %v1907 = vmul.f32 %v1868, %v1900
        %v1908 = vmul.f32 %v1869, %v1900
        %v1909 = vmul.f32 %v1870, %v1900
        %v1910 = vmul.f32 %v1871, %v1900
        %v1911 = vmul.f32 %v1872, %v1900
        %v1912 = vmul.f32 %v1873, %v1900
        %v1913 = vmul.f32 %v1874, %v1900
        %v1914 = vmul.f32 %v1875, %v1900
        %v1915 = vmul.f32 %v1876, %v1900
        %v1916 = vmul.f32 %v1877, %v1900
        %v1917 = vmul.f32 %v1878, %v1900
        %v1918 = vmul.f32 %v1879, %v1900
        %v1919 = vmul.f32 %v1880, %v1900
        %v1920 = vmul.f32 %v1881, %v1900
        %v1921 = vmul.f32 %v1882, %v1900
        %v1922 = vmul.f32 %v1883, %v1900
        %v1923 = vmul.f32 %v1884, %v1900
        %v1924 = vmul.f32 %v1885, %v1900
        %v1925 = vmul.f32 %v1886, %v1900
        %v1926 = vmul.f32 %v1887, %v1900
        %v1927 = vmul.f32 %v1888, %v1900
        %v1928 = vmul.f32 %v1889, %v1900
        %v1929 = vmul.f32 %v1890, %v1900
        %v1930 = vmul.f32 %v1891, %v1900
        %v1931 = vmul.f32 %v1892, %v1900
        %v1932 = vmul.f32 %v1893, %v1900
        %v1933 = vmul.f32 %v1894, %v1900
        %v1934 = vld [vmem:[%s7] sm:$0x1]
        %v1936 = vlaneseq
        %v1937 = vshrl.u32 %v1936, 7
        %v1938 = vsub.s32 0, %v1937
        %v1939 = vrot.slane %v1934, %v1938
        %v1941 = vadd.f32 %v1902, %v1939
        %v1942 = vadd.f32 %v1903, %v1939
        %v1943 = vadd.f32 %v1904, %v1939
        %v1944 = vadd.f32 %v1905, %v1939
        %v1945 = vadd.f32 %v1906, %v1939
        %v1946 = vadd.f32 %v1907, %v1939
        %v1947 = vadd.f32 %v1908, %v1939
        %v1948 = vadd.f32 %v1909, %v1939
        %v1949 = vadd.f32 %v1910, %v1939
        %v1950 = vadd.f32 %v1911, %v1939
        %v1951 = vadd.f32 %v1912, %v1939
        %v1952 = vadd.f32 %v1913, %v1939
        %v1953 = vadd.f32 %v1914, %v1939
        %v1954 = vadd.f32 %v1915, %v1939
        %v1955 = vadd.f32 %v1916, %v1939
        %v1956 = vadd.f32 %v1917, %v1939
        %v1957 = vadd.f32 %v1918, %v1939
        %v1958 = vadd.f32 %v1919, %v1939
        %v1959 = vadd.f32 %v1920, %v1939
        %v1960 = vadd.f32 %v1921, %v1939
        %v1961 = vadd.f32 %v1922, %v1939
        %v1962 = vadd.f32 %v1923, %v1939
        %v1963 = vadd.f32 %v1924, %v1939
        %v1964 = vadd.f32 %v1925, %v1939
        %v1965 = vadd.f32 %v1926, %v1939
        %v1966 = vadd.f32 %v1927, %v1939
        %v1967 = vadd.f32 %v1928, %v1939
        %v1968 = vadd.f32 %v1929, %v1939
        %v1969 = vadd.f32 %v1930, %v1939
        %v1970 = vadd.f32 %v1931, %v1939
        %v1971 = vadd.f32 %v1932, %v1939
        %v1972 = vadd.f32 %v1933, %v1939
        %v1973 = vmax.f32 %v1941, 0.0
        %v1974 = vmax.f32 %v1942, 0.0
        %v1975 = vmax.f32 %v1943, 0.0
        %v1976 = vmax.f32 %v1944, 0.0
        %v1977 = vmax.f32 %v1945, 0.0
        %v1978 = vmax.f32 %v1946, 0.0
        %v1979 = vmax.f32 %v1947, 0.0
        %v1980 = vmax.f32 %v1948, 0.0
        %v1981 = vmax.f32 %v1949, 0.0
        %v1982 = vmax.f32 %v1950, 0.0
        %v1983 = vmax.f32 %v1951, 0.0
        %v1984 = vmax.f32 %v1952, 0.0
        %v1985 = vmax.f32 %v1953, 0.0
        %v1986 = vmax.f32 %v1954, 0.0
        %v1987 = vmax.f32 %v1955, 0.0
        %v1988 = vmax.f32 %v1956, 0.0
        %v1989 = vmax.f32 %v1957, 0.0
        %v1990 = vmax.f32 %v1958, 0.0
        %v1991 = vmax.f32 %v1959, 0.0
        %v1992 = vmax.f32 %v1960, 0.0
        %v1993 = vmax.f32 %v1961, 0.0
        %v1994 = vmax.f32 %v1962, 0.0
        %v1995 = vmax.f32 %v1963, 0.0
        %v1996 = vmax.f32 %v1964, 0.0
        %v1997 = vmax.f32 %v1965, 0.0
        %v1998 = vmax.f32 %v1966, 0.0
        %v1999 = vmax.f32 %v1967, 0.0
        %v2000 = vmax.f32 %v1968, 0.0
        %v2001 = vmax.f32 %v1969, 0.0
        %v2002 = vmax.f32 %v1970, 0.0
        %v2003 = vmax.f32 %v1971, 0.0
        %v2004 = vmax.f32 %v1972, 0.0
        %v2005 = vmin.f32 %v1973, 6.0
        %v2006 = vmin.f32 %v1974, 6.0
        %v2007 = vmin.f32 %v1975, 6.0
        %v2008 = vmin.f32 %v1976, 6.0
        %v2009 = vmin.f32 %v1977, 6.0
        %v2010 = vmin.f32 %v1978, 6.0
        %v2011 = vmin.f32 %v1979, 6.0
        %v2012 = vmin.f32 %v1980, 6.0
        %v2013 = vmin.f32 %v1981, 6.0
        %v2014 = vmin.f32 %v1982, 6.0
        %v2015 = vmin.f32 %v1983, 6.0
        %v2016 = vmin.f32 %v1984, 6.0
        %v2017 = vmin.f32 %v1985, 6.0
        %v2018 = vmin.f32 %v1986, 6.0
        %v2019 = vmin.f32 %v1987, 6.0
        %v2020 = vmin.f32 %v1988, 6.0
        %v2021 = vmin.f32 %v1989, 6.0
        %v2022 = vmin.f32 %v1990, 6.0
        %v2023 = vmin.f32 %v1991, 6.0
        %v2024 = vmin.f32 %v1992, 6.0
        %v2025 = vmin.f32 %v1993, 6.0
        %v2026 = vmin.f32 %v1994, 6.0
        %v2027 = vmin.f32 %v1995, 6.0
        %v2028 = vmin.f32 %v1996, 6.0
        %v2029 = vmin.f32 %v1997, 6.0
        %v2030 = vmin.f32 %v1998, 6.0
        %v2031 = vmin.f32 %v1999, 6.0
        %v2032 = vmin.f32 %v2000, 6.0
        %v2033 = vmin.f32 %v2001, 6.0
        %v2034 = vmin.f32 %v2002, 6.0
        %v2035 = vmin.f32 %v2003, 6.0
        %v2036 = vmin.f32 %v2004, 6.0
        %v2037 = vpack.c.bf16 %v2006, %v2005
        %v2038 = vpack.c.bf16 %v2008, %v2007
        %v2039 = vpack.c.bf16 %v2010, %v2009
        %v2040 = vpack.c.bf16 %v2012, %v2011
        %v2041 = vpack.c.bf16 %v2014, %v2013
        %v2042 = vpack.c.bf16 %v2016, %v2015
        %v2043 = vpack.c.bf16 %v2018, %v2017
        %v2044 = vpack.c.bf16 %v2020, %v2019
        %v2045 = vpack.c.bf16 %v2022, %v2021
        %v2046 = vpack.c.bf16 %v2024, %v2023
        %v2047 = vpack.c.bf16 %v2026, %v2025
        %v2048 = vpack.c.bf16 %v2028, %v2027
        %v2049 = vpack.c.bf16 %v2030, %v2029
        %v2050 = vpack.c.bf16 %v2032, %v2031
        %v2051 = vpack.c.bf16 %v2034, %v2033
        %v2052 = vpack.c.bf16 %v2036, %v2035
        %v2053 = vld [vmem:[#allocation11] sm:$0xf]
        %v2054 = vld [vmem:[#allocation11 + $0x4] sm:$0xf]
        %v2055 = vld [vmem:[#allocation11 + $0x8] sm:$0xf]
        %v2056 = vld [vmem:[#allocation11 + $0xc] sm:$0xf]
        %v2057 = vld [vmem:[#allocation11 + $0x10] sm:$0xf]
        %v2058 = vld [vmem:[#allocation11 + $0x14] sm:$0xf]
        %v2059 = vld [vmem:[#allocation11 + $0x18] sm:$0xf]
        %v2060 = vld [vmem:[#allocation11 + $0x1c] sm:$0xf]
        %v2061 = vld [vmem:[#allocation11 + $0x20] sm:$0xf]
        %v2062 = vld [vmem:[#allocation11 + $0x24] sm:$0xf]
        %v2063 = vld [vmem:[#allocation11 + $0x28] sm:$0xf]
        %v2064 = vld [vmem:[#allocation11 + $0x2c] sm:$0xf]
        %v2065 = vld [vmem:[#allocation11 + $0x30] sm:$0xf]
        %v2066 = vld [vmem:[#allocation11 + $0x34] sm:$0xf]
        %v2067 = vld [vmem:[#allocation11 + $0x38] sm:$0xf]
        %v2068 = vld [vmem:[#allocation11 + $0x3c] sm:$0xf]
        %v2085 = vunpack.c.l.b16 %v2053
        %v2086 = vunpack.c.l.b16 %v2054
        %v2087 = vunpack.c.l.b16 %v2055
        %v2088 = vunpack.c.l.b16 %v2056
        %v2089 = vunpack.c.l.b16 %v2057
        %v2090 = vunpack.c.l.b16 %v2058
        %v2091 = vunpack.c.l.b16 %v2059
        %v2092 = vunpack.c.l.b16 %v2060
        %v2093 = vunpack.c.l.b16 %v2061
        %v2094 = vunpack.c.l.b16 %v2062
        %v2095 = vunpack.c.l.b16 %v2063
        %v2096 = vunpack.c.l.b16 %v2064
        %v2097 = vunpack.c.l.b16 %v2065
        %v2098 = vunpack.c.l.b16 %v2066
        %v2099 = vunpack.c.l.b16 %v2067
        %v2100 = vunpack.c.l.b16 %v2068
        %v2101 = vpack.c.b16 %v2086, %v2085
        %v2102 = vpack.c.b16 %v2088, %v2087
        %v2103 = vpack.c.b16 %v2090, %v2089
        %v2104 = vpack.c.b16 %v2092, %v2091
        %v2105 = vpack.c.b16 %v2094, %v2093
        %v2106 = vpack.c.b16 %v2096, %v2095
        %v2107 = vpack.c.b16 %v2098, %v2097
        %v2108 = vpack.c.b16 %v2100, %v2099
        %2117 = vmatprep.subr.bf16.mxu0 0
        %2118 = vmatpush1.bf16.msra.mxu0 %v2108
        %2119 = vmatprep.subr.bf16.mxu0 0
        %2120 = vmatpush1.bf16.msra.mxu0 %v2107
        %2121 = vmatprep.subr.bf16.mxu0 0
        %2122 = vmatpush1.bf16.msra.mxu0 %v2106
        %2123 = vmatprep.subr.bf16.mxu0 0
        %2124 = vmatpush1.bf16.msra.mxu0 %v2105
        %2125 = vmatprep.subr.bf16.mxu0 0
        %2126 = vmatpush1.bf16.msra.mxu0 %v2104
        %2127 = vmatprep.subr.bf16.mxu0 0
        %2128 = vmatpush1.bf16.msra.mxu0 %v2103
        %2129 = vmatprep.subr.bf16.mxu0 0
        %2130 = vmatpush1.bf16.msra.mxu0 %v2102
        %2131 = vmatprep.subr.bf16.mxu0 0
        %2132 = vmatpush1.bf16.msra.mxu0 %v2101
        %2133 = vmatprep.subr.bf16.mxu0 0
        %2134 = vmatpush2.bf16.msra.mxu0 0
        %2135 = vmatprep.subr.bf16.mxu0 0
        %2136 = vmatpush2.bf16.msra.mxu0 0
        %2137 = vmatprep.subr.bf16.mxu0 0
        %2138 = vmatpush2.bf16.msra.mxu0 0
        %2139 = vmatprep.subr.bf16.mxu0 0
        %2140 = vmatpush2.bf16.msra.mxu0 0
        %2141 = vmatprep.subr.bf16.mxu0 0
        %2142 = vmatpush2.bf16.msra.mxu0 0
        %2143 = vmatprep.subr.bf16.mxu0 0
        %2144 = vmatpush2.bf16.msra.mxu0 0
        %2145 = vmatprep.subr.bf16.mxu0 0
        %2146 = vmatpush2.bf16.msra.mxu0 0
        %2147 = vmatprep.subr.bf16.mxu0 0
        %2148 = vmatpush2.bf16.msra.mxu0 0
        %2149 = vmatprep.mubr.bf16.mxu0 0
        %2150 = vmatmul.mubr.bf16.gmra.mxu0 %v2037
        %v2151 = vpop.f32.mrf.mxu0
        %v2152 = vadd.f32 0.0, %v2151
        %v2153 = vpop.f32.mrf.mxu0
        %v2154 = vpop.f32.mrf.mxu0
        %v2155 = vadd.f32 0.0, %v2154
        %v2156 = vpop.f32.mrf.mxu0
        %2157 = vmatprep.mubr.bf16.mxu0 0
        %2158 = vmatmul.mubr.bf16.gmra.mxu0 %v2038
        %v2159 = vpop.f32.mrf.mxu0
        %v2160 = vadd.f32 0.0, %v2159
        %v2161 = vpop.f32.mrf.mxu0
        %v2162 = vpop.f32.mrf.mxu0
        %v2163 = vadd.f32 0.0, %v2162
        %v2164 = vpop.f32.mrf.mxu0
        %2165 = vmatprep.mubr.bf16.mxu0 0
        %2166 = vmatmul.mubr.bf16.gmra.mxu0 %v2039
        %v2167 = vpop.f32.mrf.mxu0
        %v2168 = vadd.f32 0.0, %v2167
        %v2169 = vpop.f32.mrf.mxu0
        %v2170 = vpop.f32.mrf.mxu0
        %v2171 = vadd.f32 0.0, %v2170
        %v2172 = vpop.f32.mrf.mxu0
        %2173 = vmatprep.mubr.bf16.mxu0 0
        %2174 = vmatmul.mubr.bf16.gmra.mxu0 %v2040
        %v2175 = vpop.f32.mrf.mxu0
        %v2176 = vadd.f32 0.0, %v2175
        %v2177 = vpop.f32.mrf.mxu0
        %v2178 = vpop.f32.mrf.mxu0
        %v2179 = vadd.f32 0.0, %v2178
        %v2180 = vpop.f32.mrf.mxu0
        %2181 = vmatprep.mubr.bf16.mxu0 0
        %2182 = vmatmul.mubr.bf16.gmra.mxu0 %v2041
        %v2183 = vpop.f32.mrf.mxu0
        %v2184 = vadd.f32 0.0, %v2183
        %v2185 = vpop.f32.mrf.mxu0
        %v2186 = vpop.f32.mrf.mxu0
        %v2187 = vadd.f32 0.0, %v2186
        %v2188 = vpop.f32.mrf.mxu0
        %2189 = vmatprep.mubr.bf16.mxu0 0
        %2190 = vmatmul.mubr.bf16.gmra.mxu0 %v2042
        %v2191 = vpop.f32.mrf.mxu0
        %v2192 = vadd.f32 0.0, %v2191
        %v2193 = vpop.f32.mrf.mxu0
        %v2194 = vpop.f32.mrf.mxu0
        %v2195 = vadd.f32 0.0, %v2194
        %v2196 = vpop.f32.mrf.mxu0
        %2197 = vmatprep.mubr.bf16.mxu0 0
        %2198 = vmatmul.mubr.bf16.gmra.mxu0 %v2043
        %v2199 = vpop.f32.mrf.mxu0
        %v2200 = vadd.f32 0.0, %v2199
        %v2201 = vpop.f32.mrf.mxu0
        %v2202 = vpop.f32.mrf.mxu0
        %v2203 = vadd.f32 0.0, %v2202
        %v2204 = vpop.f32.mrf.mxu0
        %2205 = vmatprep.mubr.bf16.mxu0 0
        %2206 = vmatmul.mubr.bf16.gmra.mxu0 %v2044
        %v2207 = vpop.f32.mrf.mxu0
        %v2208 = vadd.f32 0.0, %v2207
        %v2209 = vpop.f32.mrf.mxu0
        %v2210 = vpop.f32.mrf.mxu0
        %v2211 = vadd.f32 0.0, %v2210
        %v2212 = vpop.f32.mrf.mxu0
        %2213 = vmatprep.mubr.bf16.mxu0 0
        %2214 = vmatmul.mubr.bf16.gmra.mxu0 %v2045
        %v2215 = vpop.f32.mrf.mxu0
        %v2216 = vadd.f32 0.0, %v2215
        %v2217 = vpop.f32.mrf.mxu0
        %v2218 = vpop.f32.mrf.mxu0
        %v2219 = vadd.f32 0.0, %v2218
        %v2220 = vpop.f32.mrf.mxu0
        %2221 = vmatprep.mubr.bf16.mxu0 0
        %2222 = vmatmul.mubr.bf16.gmra.mxu0 %v2046
        %v2223 = vpop.f32.mrf.mxu0
        %v2224 = vadd.f32 0.0, %v2223
        %v2225 = vpop.f32.mrf.mxu0
        %v2226 = vpop.f32.mrf.mxu0
        %v2227 = vadd.f32 0.0, %v2226
        %v2228 = vpop.f32.mrf.mxu0
        %2229 = vmatprep.mubr.bf16.mxu0 0
        %2230 = vmatmul.mubr.bf16.gmra.mxu0 %v2047
        %v2231 = vpop.f32.mrf.mxu0
        %v2232 = vadd.f32 0.0, %v2231
        %v2233 = vpop.f32.mrf.mxu0
        %v2234 = vpop.f32.mrf.mxu0
        %v2235 = vadd.f32 0.0, %v2234
        %v2236 = vpop.f32.mrf.mxu0
        %2237 = vmatprep.mubr.bf16.mxu0 0
        %2238 = vmatmul.mubr.bf16.gmra.mxu0 %v2048
        %v2239 = vpop.f32.mrf.mxu0
        %v2240 = vadd.f32 0.0, %v2239
        %v2241 = vpop.f32.mrf.mxu0
        %v2242 = vpop.f32.mrf.mxu0
        %v2243 = vadd.f32 0.0, %v2242
        %v2244 = vpop.f32.mrf.mxu0
        %2245 = vmatprep.mubr.bf16.mxu0 0
        %2246 = vmatmul.mubr.bf16.gmra.mxu0 %v2049
        %v2247 = vpop.f32.mrf.mxu0
        %v2248 = vadd.f32 0.0, %v2247
        %v2249 = vpop.f32.mrf.mxu0
        %v2250 = vpop.f32.mrf.mxu0
        %v2251 = vadd.f32 0.0, %v2250
        %v2252 = vpop.f32.mrf.mxu0
        %2253 = vmatprep.mubr.bf16.mxu0 0
        %2254 = vmatmul.mubr.bf16.gmra.mxu0 %v2050
        %v2255 = vpop.f32.mrf.mxu0
        %v2256 = vadd.f32 0.0, %v2255
        %v2257 = vpop.f32.mrf.mxu0
        %v2258 = vpop.f32.mrf.mxu0
        %v2259 = vadd.f32 0.0, %v2258
        %v2260 = vpop.f32.mrf.mxu0
        %2261 = vmatprep.mubr.bf16.mxu0 0
        %2262 = vmatmul.mubr.bf16.gmra.mxu0 %v2051
        %v2263 = vpop.f32.mrf.mxu0
        %v2264 = vadd.f32 0.0, %v2263
        %v2265 = vpop.f32.mrf.mxu0
        %v2266 = vpop.f32.mrf.mxu0
        %v2267 = vadd.f32 0.0, %v2266
        %v2268 = vpop.f32.mrf.mxu0
        %2269 = vmatprep.mubr.bf16.mxu0 0
        %2270 = vmatmul.mubr.bf16.gmra.mxu0 %v2052
        %v2271 = vpop.f32.mrf.mxu0
        %v2272 = vadd.f32 0.0, %v2271
        %v2273 = vpop.f32.mrf.mxu0
        %v2274 = vpop.f32.mrf.mxu0
        %v2275 = vadd.f32 0.0, %v2274
        %v2276 = vpop.f32.mrf.mxu0
        %2277 = vdwg.mxu0
        %v2278 = vld [vmem:[%s9] sm:$0x1]
        %v2280 = vlaneseq
        %v2281 = vshrl.u32 %v2280, 7
        %v2282 = vsub.s32 0, %v2281
        %v2283 = vrot.slane %v2278, %v2282
        %v2285 = vmul.f32 %v2152, %v2283
        %v2286 = vmul.f32 %v2155, %v2283
        %v2287 = vmul.f32 %v2160, %v2283
        %v2288 = vmul.f32 %v2163, %v2283
        %v2289 = vmul.f32 %v2168, %v2283
        %v2290 = vmul.f32 %v2171, %v2283
        %v2291 = vmul.f32 %v2176, %v2283
        %v2292 = vmul.f32 %v2179, %v2283
        %v2293 = vmul.f32 %v2184, %v2283
        %v2294 = vmul.f32 %v2187, %v2283
        %v2295 = vmul.f32 %v2192, %v2283
        %v2296 = vmul.f32 %v2195, %v2283
        %v2297 = vmul.f32 %v2200, %v2283
        %v2298 = vmul.f32 %v2203, %v2283
        %v2299 = vmul.f32 %v2208, %v2283
        %v2300 = vmul.f32 %v2211, %v2283
        %v2301 = vmul.f32 %v2216, %v2283
        %v2302 = vmul.f32 %v2219, %v2283
        %v2303 = vmul.f32 %v2224, %v2283
        %v2304 = vmul.f32 %v2227, %v2283
        %v2305 = vmul.f32 %v2232, %v2283
        %v2306 = vmul.f32 %v2235, %v2283
        %v2307 = vmul.f32 %v2240, %v2283
        %v2308 = vmul.f32 %v2243, %v2283
        %v2309 = vmul.f32 %v2248, %v2283
        %v2310 = vmul.f32 %v2251, %v2283
        %v2311 = vmul.f32 %v2256, %v2283
        %v2312 = vmul.f32 %v2259, %v2283
        %v2313 = vmul.f32 %v2264, %v2283
        %v2314 = vmul.f32 %v2267, %v2283
        %v2315 = vmul.f32 %v2272, %v2283
        %v2316 = vmul.f32 %v2275, %v2283
        %v2317 = vld [vmem:[%s10] sm:$0x1]
        %v2319 = vlaneseq
        %v2320 = vshrl.u32 %v2319, 7
        %v2321 = vsub.s32 0, %v2320
        %v2322 = vrot.slane %v2317, %v2321
        %v2324 = vadd.f32 %v2285, %v2322
        %v2325 = vadd.f32 %v2286, %v2322
        %v2326 = vadd.f32 %v2287, %v2322
        %v2327 = vadd.f32 %v2288, %v2322
        %v2328 = vadd.f32 %v2289, %v2322
        %v2329 = vadd.f32 %v2290, %v2322
        %v2330 = vadd.f32 %v2291, %v2322
        %v2331 = vadd.f32 %v2292, %v2322
        %v2332 = vadd.f32 %v2293, %v2322
        %v2333 = vadd.f32 %v2294, %v2322
        %v2334 = vadd.f32 %v2295, %v2322
        %v2335 = vadd.f32 %v2296, %v2322
        %v2336 = vadd.f32 %v2297, %v2322
        %v2337 = vadd.f32 %v2298, %v2322
        %v2338 = vadd.f32 %v2299, %v2322
        %v2339 = vadd.f32 %v2300, %v2322
        %v2340 = vadd.f32 %v2301, %v2322
        %v2341 = vadd.f32 %v2302, %v2322
        %v2342 = vadd.f32 %v2303, %v2322
        %v2343 = vadd.f32 %v2304, %v2322
        %v2344 = vadd.f32 %v2305, %v2322
        %v2345 = vadd.f32 %v2306, %v2322
        %v2346 = vadd.f32 %v2307, %v2322
        %v2347 = vadd.f32 %v2308, %v2322
        %v2348 = vadd.f32 %v2309, %v2322
        %v2349 = vadd.f32 %v2310, %v2322
        %v2350 = vadd.f32 %v2311, %v2322
        %v2351 = vadd.f32 %v2312, %v2322
        %v2352 = vadd.f32 %v2313, %v2322
        %v2353 = vadd.f32 %v2314, %v2322
        %v2354 = vadd.f32 %v2315, %v2322
        %v2355 = vadd.f32 %v2316, %v2322
        %v2356 = vadd.f32 %v2324, %v464
        %v2357 = vadd.f32 %v2325, %v465
        %v2358 = vadd.f32 %v2326, %v466
        %v2359 = vadd.f32 %v2327, %v467
        %v2360 = vadd.f32 %v2328, %v468
        %v2361 = vadd.f32 %v2329, %v469
        %v2362 = vadd.f32 %v2330, %v470
        %v2363 = vadd.f32 %v2331, %v471
        %v2364 = vadd.f32 %v2332, %v472
        %v2365 = vadd.f32 %v2333, %v473
        %v2366 = vadd.f32 %v2334, %v474
        %v2367 = vadd.f32 %v2335, %v475
        %v2368 = vadd.f32 %v2336, %v476
        %v2369 = vadd.f32 %v2337, %v477
        %v2370 = vadd.f32 %v2338, %v478
        %v2371 = vadd.f32 %v2339, %v479
        %v2372 = vadd.f32 %v2340, %v480
        %v2373 = vadd.f32 %v2341, %v481
        %v2374 = vadd.f32 %v2342, %v482
        %v2375 = vadd.f32 %v2343, %v483
        %v2376 = vadd.f32 %v2344, %v484
        %v2377 = vadd.f32 %v2345, %v485
        %v2378 = vadd.f32 %v2346, %v486
        %v2379 = vadd.f32 %v2347, %v487
        %v2380 = vadd.f32 %v2348, %v488
        %v2381 = vadd.f32 %v2349, %v489
        %v2382 = vadd.f32 %v2350, %v490
        %v2383 = vadd.f32 %v2351, %v491
        %v2384 = vadd.f32 %v2352, %v492
        %v2385 = vadd.f32 %v2353, %v493
        %v2386 = vadd.f32 %v2354, %v494
        %v2387 = vadd.f32 %v2355, %v495
        %2388 = vst [vmem:[%s462] sm:$0xff] %v2356
        %2389 = vst [vmem:[%s462 + $0x8] sm:$0xff] %v2357
        %2390 = vst [vmem:[%s462 + $0x10] sm:$0xff] %v2358
        %2391 = vst [vmem:[%s462 + $0x18] sm:$0xff] %v2359
        %2392 = vst [vmem:[%s462 + $0x20] sm:$0xff] %v2360
        %2393 = vst [vmem:[%s462 + $0x28] sm:$0xff] %v2361
        %2394 = vst [vmem:[%s462 + $0x30] sm:$0xff] %v2362
        %2395 = vst [vmem:[%s462 + $0x38] sm:$0xff] %v2363
        %2396 = vst [vmem:[%s462 + $0x40] sm:$0xff] %v2364
        %2397 = vst [vmem:[%s462 + $0x48] sm:$0xff] %v2365
        %2398 = vst [vmem:[%s462 + $0x50] sm:$0xff] %v2366
        %2399 = vst [vmem:[%s462 + $0x58] sm:$0xff] %v2367
        %2400 = vst [vmem:[%s462 + $0x60] sm:$0xff] %v2368
        %2401 = vst [vmem:[%s462 + $0x68] sm:$0xff] %v2369
        %2402 = vst [vmem:[%s462 + $0x70] sm:$0xff] %v2370
        %2403 = vst [vmem:[%s462 + $0x78] sm:$0xff] %v2371
        %2404 = vst [vmem:[%s462 + $0x80] sm:$0xff] %v2372
        %2405 = vst [vmem:[%s462 + $0x88] sm:$0xff] %v2373
        %2406 = vst [vmem:[%s462 + $0x90] sm:$0xff] %v2374
        %2407 = vst [vmem:[%s462 + $0x98] sm:$0xff] %v2375
        %2408 = vst [vmem:[%s462 + $0xa0] sm:$0xff] %v2376
        %2409 = vst [vmem:[%s462 + $0xa8] sm:$0xff] %v2377
        %2410 = vst [vmem:[%s462 + $0xb0] sm:$0xff] %v2378
        %2411 = vst [vmem:[%s462 + $0xb8] sm:$0xff] %v2379
        %2412 = vst [vmem:[%s462 + $0xc0] sm:$0xff] %v2380
        %2413 = vst [vmem:[%s462 + $0xc8] sm:$0xff] %v2381
        %2414 = vst [vmem:[%s462 + $0xd0] sm:$0xff] %v2382
        %2415 = vst [vmem:[%s462 + $0xd8] sm:$0xff] %v2383
        %2416 = vst [vmem:[%s462 + $0xe0] sm:$0xff] %v2384
        %2417 = vst [vmem:[%s462 + $0xe8] sm:$0xff] %v2385
        %2418 = vst [vmem:[%s462 + $0xf0] sm:$0xff] %v2386
        %2419 = vst [vmem:[%s462 + $0xf8] sm:$0xff] %v2387
        %s2420 = sand.u32 %s274, 1
        %s2421 = scalar_lea.sflag [#allocation5], %s2420
        %s2422 = sand.u32 %s274, 1
        %s2423 = smul.addr %s2422, 256
        %s2424 = scalar_lea.vmem [#allocation12], %s2423
        // Predicated region
        $region85: #{tpu_custom_call.1} parent=63 // pred_check
          %p2425 = pneg %p284
        $region86: #{tpu_custom_call.1} parent=63 // pred_check_branch
          %2427 = sbr.rel (%p2425) target = $region88
        $region87: #{tpu_custom_call.1} parent=63 // pred_region
          %s2429 = ssub.s32 4096, 4096
          %2430 = vsyncadd %s2421, %s2429
          %s2431 = smul.addr %s30, 32
          %s2432 = smul.addr %s2431, 128
          %s2433 = scalar_lea.hbm %s11, %s2432
          %s2434 = sshll.u32 %s2424, 4
          %s2435 = int_to_ptr.vmem [resolvable:$true] %s2434
          %2440 = dma.vmem_to_hbm [thread:$0]  %s2435, 4096, %s2433, %s2421, 128, 128, 8
        $region88: #{tpu_custom_call.1} parent=63 // pred_fallthru
          _
      $region64: #{tpu_custom_call.1} parent=5 // pred_fallthru
        _
      %p2441 = scmp.le.s32.totalorder 2, %s25
      // Predicated region
      $region89: #{tpu_custom_call.1} parent=5 // pred_check
        %p2442 = pneg %p2441
      $region90: #{tpu_custom_call.1} parent=5 // pred_check_branch
        %2444 = sbr.rel (%p2442) target = $region92
      $region91: #{tpu_custom_call.1} parent=5 // pred_region
        %s2445 = ssub.s32 %s25, 2
        // Predicated region
        $region93: #{tpu_custom_call.1} parent=91 // pred_check
          %p2446 = pneg %p290
        $region94: #{tpu_custom_call.1} parent=91 // pred_check_branch
          %2448 = sbr.rel (%p2446) target = $region96
        $region95: #{tpu_custom_call.1} parent=91 // pred_region
          %s2449 = sand.u32 %s275, 1
          %s2450 = scalar_lea.sflag [#allocation5], %s2449
          %s2451 = sand.u32 %s275, 1
          %s2452 = smul.addr %s2451, 256
          %s2453 = scalar_lea.vmem [#allocation12], %s2452
          %2454 = dma.done %s2450, 4096
        $region96: #{tpu_custom_call.1} parent=91 // pred_fallthru
          _
      $region92: #{tpu_custom_call.1} parent=5 // pred_fallthru
        _
    $region6: #{tpu_custom_call.1} parent=1 // loop_footer
      %s29 = sadd.s32 1, %s25
    $region7: #{tpu_custom_call.1} parent=1 // loop_footer_branch
      %24 = sbr.rel target = $region3
    $region8: #{tpu_custom_call.1} parent=1 // loop_exit
      _
    %2455 = vsyncpa [#allocation4], 1
    %s2456 = scalar_lea.sflag [#allocation4], 1
    %2457 = vsyncpa %s2456, 1
    %2458 = vsyncpa [#allocation7], 1
    %2459 = vsyncpa [#allocation10], 1
    %2460 = vsyncpa [#allocation5], 1
    %s2461 = scalar_lea.sflag [#allocation5], 1
    %2462 = vsyncpa %s2461, 1

</llo_original>
